<compile_context>
chip_gen: v6e
topology: v6e:2x2x1
jax: 0.10.0
libtpu: 0.0.40
codegen_flags: <defaults>
</compile_context>

<pallas_src>
import functools

import jax
import jax.numpy as jnp
from jax import lax
from jax.experimental import pallas as pl
from jax.experimental.pallas import tpu as pltpu


def _round_up(v, m):
    return -(-v // m) * m


def _down_kernel(xw_ref, w1_ref, b1_ref, w2_ref, b2_ref, o_ref,
                 p_ref, h_ref, *, n, wp, span):
    """Fused MaxPool2d(2) -> Conv3x3 -> ReLU -> Conv3x3 -> ReLU.

    xw_ref: (4, n, c_in, hp*wp)   four slabs of each 2x2 pooling window
    w1_ref: (9, c_mid, ci_pad)    tap-major conv1 weights (K zero-padded)
    b1_ref: (c_mid, 1)
    w2_ref: (9, c_out, cm_pad)    tap-major conv2 weights (K zero-padded)
    b2_ref: (c_out, 1)
    o_ref : (c_out, span)         span = n*hp*wp (batch planes side by side)
    p_ref : (ci_pad, span+tail)   VMEM scratch: pooled planes
    h_ref : (cm_pad, span+tail)   VMEM scratch: conv1 + relu planes
    """
    plane = span // n
    c_in = xw_ref.shape[2]
    c_mid = w1_ref.shape[1]

    # Zero the padded plane scratches: the K-padding rows and the lane tail
    # must be deterministic (they only ever feed discarded output columns).
    p_ref[...] = jnp.zeros_like(p_ref)
    h_ref[...] = jnp.zeros_like(h_ref)

    # ---- MaxPool2d(2): elementwise max of the four window slabs (VPU).
    for b in range(n):
        pooled = jnp.maximum(jnp.maximum(xw_ref[0, b], xw_ref[1, b]),
                             jnp.maximum(xw_ref[2, b], xw_ref[3, b]))
        p_ref[0:c_in, b * plane:(b + 1) * plane] = pooled

    # ---- Conv2d #1 (3x3, valid) + ReLU: nine tap-wise MXU matmuls.
    # Tap (kh, kw) of the output at flattened plane position s reads the
    # input plane at position s + kh*wp + kw, i.e. a static lane shift, so
    # each tap is (c_mid, ci_pad) @ (ci_pad, span) with f32 accumulation.
    # Out-of-row / out-of-image positions produce garbage columns that the
    # wrapper crops away; valid outputs only ever read real in-image data.
    acc1 = None
    for kh in range(3):
        for kw in range(3):
            t = kh * wp + kw
            part = jnp.dot(w1_ref[kh * 3 + kw], p_ref[:, t:t + span],
                           preferred_element_type=jnp.float32)
            acc1 = part if acc1 is None else acc1 + part
    h_ref[0:c_mid, 0:span] = jnp.maximum(acc1 + b1_ref[...], 0.0)

    # ---- Conv2d #2 (3x3, valid) + ReLU (same tap-wise MXU structure).
    acc2 = None
    for kh in range(3):
        for kw in range(3):
            t = kh * wp + kw
            part = jnp.dot(w2_ref[kh * 3 + kw], h_ref[:, t:t + span],
                           preferred_element_type=jnp.float32)
            acc2 = part if acc2 is None else acc2 + part
    o_ref[...] = jnp.maximum(acc2 + b2_ref[...], 0.0)


def down_pallas(x, w1, b1, w2, b2):
    """Down.forward(x) with x: (N, C_in, H, W) float32, NCHW."""
    n, c_in, h, w = x.shape
    c_mid = w1.shape[0]
    c_out = w2.shape[0]
    hp, wp = h // 2, w // 2          # MaxPool2d(2) floors odd sizes
    oh2, ow2 = hp - 4, wp - 4        # two valid 3x3 convolutions
    plane = hp * wp
    span = n * plane                 # all batch planes side by side on lanes
    tail = 2 * wp + 8                # >= max tap shift (2*wp + 2)
    ci_pad = _round_up(c_in, 8)      # pad matmul contraction dims to 8
    cm_pad = _round_up(c_mid, 8)

    # Layout glue (cheap XLA ops on tiny tensors): expose the 2x2 pooling
    # window as a leading axis of 4 with the pooled plane flattened, so the
    # in-kernel pool is a pure elementwise max and the slabs are lane-dense.
    x = x[:, :, :hp * 2, :wp * 2]
    xw = x.reshape(n, c_in, hp, 2, wp, 2).transpose(3, 5, 0, 1, 2, 4)
    xw = xw.reshape(4, n, c_in, plane)

    # Tap-major weights (w_t[kh*3+kw] == w[:, :, kh, kw]), zero-padded K.
    w1t = jnp.transpose(w1, (2, 3, 0, 1)).reshape(9, c_mid, c_in)
    w1t = jnp.pad(w1t, ((0, 0), (0, 0), (0, ci_pad - c_in)))
    w2t = jnp.transpose(w2, (2, 3, 0, 1)).reshape(9, c_out, c_mid)
    w2t = jnp.pad(w2t, ((0, 0), (0, 0), (0, cm_pad - c_mid)))

    kernel = functools.partial(_down_kernel, n=n, wp=wp, span=span)
    vmem = pl.BlockSpec(memory_space=pltpu.MemorySpace.VMEM)

    out_flat = pl.pallas_call(
        kernel,
        out_shape=jax.ShapeDtypeStruct((c_out, span), jnp.float32),
        in_specs=[vmem, vmem, vmem, vmem, vmem],
        out_specs=vmem,
        scratch_shapes=[
            pltpu.VMEM((ci_pad, span + tail), jnp.float32),
            pltpu.VMEM((cm_pad, span + tail), jnp.float32),
        ],
    )(xw, w1t, b1.reshape(c_mid, 1), w2t, b2.reshape(c_out, 1))

    # The kernel writes full lane-dense planes; crop out the valid region.
    out = out_flat.reshape(c_out, n, hp, wp)[:, :, :oh2, :ow2]
    return out.transpose(1, 0, 2, 3)


def down_ref(x, w1, b1, w2, b2):
    """Pure-JAX reference of the PyTorch Down module."""
    n, c, h, w = x.shape
    xp = x.reshape(n, c, h // 2, 2, w // 2, 2).max(axis=(3, 5))
    y = lax.conv_general_dilated(
        xp, w1, (1, 1), 'VALID', dimension_numbers=('NCHW', 'OIHW', 'NCHW'))
    y = jnp.maximum(y + b1[None, :, None, None], 0.0)
    y = lax.conv_general_dilated(
        y, w2, (1, 1), 'VALID', dimension_numbers=('NCHW', 'OIHW', 'NCHW'))
    y = jnp.maximum(y + b2[None, :, None, None], 0.0)
    return y


if __name__ == "__main__":
    key = jax.random.PRNGKey(0)
    kx, k1, k2, k3, k4 = jax.random.split(key, 5)

    N, C_IN, H, W = 2, 4, 16, 16
    C_OUT = 8

    x = jax.random.normal(kx, (N, C_IN, H, W), jnp.float32)

    # Deterministic parameter init (PyTorch-style uniform bound 1/sqrt(fan_in)).
    bnd1 = 1.0 / (C_IN * 9) ** 0.5
    w1 = jax.random.uniform(k1, (C_OUT, C_IN, 3, 3), jnp.float32, -bnd1, bnd1)
    b1 = jax.random.uniform(k2, (C_OUT,), jnp.float32, -bnd1, bnd1)
    bnd2 = 1.0 / (C_OUT * 9) ** 0.5
    w2 = jax.random.uniform(k3, (C_OUT, C_OUT, 3, 3), jnp.float32, -bnd2, bnd2)
    b2 = jax.random.uniform(k4, (C_OUT,), jnp.float32, -bnd2, bnd2)

    out = jax.block_until_ready(down_pallas(x, w1, b1, w2, b2))
    ref = down_ref(x, w1, b1, w2, b2)

    assert out.shape == (N, C_OUT, H // 2 - 4, W // 2 - 4), out.shape
    # Both the kernel (MXU) and the XLA reference use the TPU's default f32
    # matmul precision; typical error is ~1e-5, the bound below also covers
    # any precision-mode mismatch between the two compilation paths.
    max_err = float(jnp.max(jnp.abs(out - ref)))
    assert max_err < 1e-2, max_err
    print("KERNEL_OK")
</pallas_src>

<mosaic_0001>
module attributes {stable_mosaic.version = 11 : i64} {
  func.func @_down_kernel(%arg0: memref<4x2x4x64xf32, #tpu.memory_space<vmem>>, %arg1: memref<9x8x8xf32, #tpu.memory_space<vmem>>, %arg2: memref<8x1xf32, #tpu.memory_space<vmem>>, %arg3: memref<9x8x8xf32, #tpu.memory_space<vmem>>, %arg4: memref<8x1xf32, #tpu.memory_space<vmem>>, %arg5: memref<8x128xf32, #tpu.memory_space<vmem>>, %arg6: memref<8x152xf32, #tpu.memory_space<vmem>>, %arg7: memref<8x152xf32, #tpu.memory_space<vmem>>) attributes {dimension_semantics = [], scalar_prefetch = 0 : i64, scratch_operands = 2 : i64, tpu.core_type = #tpu.core_type<tc>} {
    %cst = arith.constant 0.000000e+00 : f32
    %0 = vector.broadcast %cst : f32 to vector<8x152xf32>
    %c0 = arith.constant 0 : index
    %c0_0 = arith.constant 0 : index
    %1 = vector.load %arg6[%c0, %c0_0] : memref<8x152xf32, #tpu.memory_space<vmem>>, vector<8x152xf32>
    tpu.vector_store %arg6[%c0, %c0_0], %0 {strides = array<i32>} : memref<8x152xf32, #tpu.memory_space<vmem>>, vector<8x152xf32>,
    %cst_1 = arith.constant 0.000000e+00 : f32
    %2 = vector.broadcast %cst_1 : f32 to vector<8x152xf32>
    %c0_2 = arith.constant 0 : index
    %c0_3 = arith.constant 0 : index
    %3 = vector.load %arg7[%c0_2, %c0_3] : memref<8x152xf32, #tpu.memory_space<vmem>>, vector<8x152xf32>
    tpu.vector_store %arg7[%c0_2, %c0_3], %2 {strides = array<i32>} : memref<8x152xf32, #tpu.memory_space<vmem>>, vector<8x152xf32>,
    %c0_4 = arith.constant 0 : index
    %c0_5 = arith.constant 0 : index
    %c0_6 = arith.constant 0 : index
    %c0_7 = arith.constant 0 : index
    %4 = vector.load %arg0[%c0_4, %c0_5, %c0_6, %c0_7] : memref<4x2x4x64xf32, #tpu.memory_space<vmem>>, vector<1x1x4x64xf32>
    %5 = vector.shape_cast %4 : vector<1x1x4x64xf32> to vector<4x64xf32>
    %c1 = arith.constant 1 : index
    %c0_8 = arith.constant 0 : index
    %c0_9 = arith.constant 0 : index
    %c0_10 = arith.constant 0 : index
    %6 = vector.load %arg0[%c1, %c0_8, %c0_9, %c0_10] : memref<4x2x4x64xf32, #tpu.memory_space<vmem>>, vector<1x1x4x64xf32>
    %7 = vector.shape_cast %6 : vector<1x1x4x64xf32> to vector<4x64xf32>
    %8 = arith.maximumf %5, %7 : vector<4x64xf32>
    %c2 = arith.constant 2 : index
    %c0_11 = arith.constant 0 : index
    %c0_12 = arith.constant 0 : index
    %c0_13 = arith.constant 0 : index
    %9 = vector.load %arg0[%c2, %c0_11, %c0_12, %c0_13] : memref<4x2x4x64xf32, #tpu.memory_space<vmem>>, vector<1x1x4x64xf32>
    %10 = vector.shape_cast %9 : vector<1x1x4x64xf32> to vector<4x64xf32>
    %c3 = arith.constant 3 : index
    %c0_14 = arith.constant 0 : index
    %c0_15 = arith.constant 0 : index
    %c0_16 = arith.constant 0 : index
    %11 = vector.load %arg0[%c3, %c0_14, %c0_15, %c0_16] : memref<4x2x4x64xf32, #tpu.memory_space<vmem>>, vector<1x1x4x64xf32>
    %12 = vector.shape_cast %11 : vector<1x1x4x64xf32> to vector<4x64xf32>
    %13 = arith.maximumf %10, %12 : vector<4x64xf32>
    %14 = arith.maximumf %8, %13 : vector<4x64xf32>
    %c0_17 = arith.constant 0 : index
    %c0_18 = arith.constant 0 : index
    %15 = vector.load %arg6[%c0_17, %c0_18] : memref<8x152xf32, #tpu.memory_space<vmem>>, vector<4x64xf32>
    tpu.vector_store %arg6[%c0_17, %c0_18], %14 {strides = array<i32>} : memref<8x152xf32, #tpu.memory_space<vmem>>, vector<4x64xf32>,
    %c0_19 = arith.constant 0 : index
    %c1_20 = arith.constant 1 : index
    %c0_21 = arith.constant 0 : index
    %c0_22 = arith.constant 0 : index
    %16 = vector.load %arg0[%c0_19, %c1_20, %c0_21, %c0_22] : memref<4x2x4x64xf32, #tpu.memory_space<vmem>>, vector<1x1x4x64xf32>
    %17 = vector.shape_cast %16 : vector<1x1x4x64xf32> to vector<4x64xf32>
    %c1_23 = arith.constant 1 : index
    %c1_24 = arith.constant 1 : index
    %c0_25 = arith.constant 0 : index
    %c0_26 = arith.constant 0 : index
    %18 = vector.load %arg0[%c1_23, %c1_24, %c0_25, %c0_26] : memref<4x2x4x64xf32, #tpu.memory_space<vmem>>, vector<1x1x4x64xf32>
    %19 = vector.shape_cast %18 : vector<1x1x4x64xf32> to vector<4x64xf32>
    %20 = arith.maximumf %17, %19 : vector<4x64xf32>
    %c2_27 = arith.constant 2 : index
    %c1_28 = arith.constant 1 : index
    %c0_29 = arith.constant 0 : index
    %c0_30 = arith.constant 0 : index
    %21 = vector.load %arg0[%c2_27, %c1_28, %c0_29, %c0_30] : memref<4x2x4x64xf32, #tpu.memory_space<vmem>>, vector<1x1x4x64xf32>
    %22 = vector.shape_cast %21 : vector<1x1x4x64xf32> to vector<4x64xf32>
    %c3_31 = arith.constant 3 : index
    %c1_32 = arith.constant 1 : index
    %c0_33 = arith.constant 0 : index
    %c0_34 = arith.constant 0 : index
    %23 = vector.load %arg0[%c3_31, %c1_32, %c0_33, %c0_34] : memref<4x2x4x64xf32, #tpu.memory_space<vmem>>, vector<1x1x4x64xf32>
    %24 = vector.shape_cast %23 : vector<1x1x4x64xf32> to vector<4x64xf32>
    %25 = arith.maximumf %22, %24 : vector<4x64xf32>
    %26 = arith.maximumf %20, %25 : vector<4x64xf32>
    %c0_35 = arith.constant 0 : index
    %c64 = arith.constant 64 : index
    %27 = vector.load %arg6[%c0_35, %c64] : memref<8x152xf32, #tpu.memory_space<vmem>>, vector<4x64xf32>
    tpu.vector_store %arg6[%c0_35, %c64], %26 {strides = array<i32>} : memref<8x152xf32, #tpu.memory_space<vmem>>, vector<4x64xf32>,
    %c0_36 = arith.constant 0 : index
    %c0_37 = arith.constant 0 : index
    %c0_38 = arith.constant 0 : index
    %28 = vector.load %arg1[%c0_36, %c0_37, %c0_38] : memref<9x8x8xf32, #tpu.memory_space<vmem>>, vector<1x8x8xf32>
    %29 = vector.shape_cast %28 : vector<1x8x8xf32> to vector<8x8xf32>
    %c0_39 = arith.constant 0 : index
    %c0_40 = arith.constant 0 : index
    %30 = vector.load %arg6[%c0_39, %c0_40] : memref<8x152xf32, #tpu.memory_space<vmem>>, vector<8x128xf32>
    %cst_41 = arith.constant dense<0.000000e+00> : vector<8x128xf32>
    %31 = tpu.matmul %29, %30, %cst_41 {dimension_numbers = #tpu.dot_dimension_numbers<[1], [0], [0], [1], [0, 0, 1, 1], [], []>} : vector<8x8xf32>, vector<8x128xf32>, vector<8x128xf32> -> vector<8x128xf32>
    %c1_42 = arith.constant 1 : index
    %c0_43 = arith.constant 0 : index
    %c0_44 = arith.constant 0 : index
    %32 = vector.load %arg1[%c1_42, %c0_43, %c0_44] : memref<9x8x8xf32, #tpu.memory_space<vmem>>, vector<1x8x8xf32>
    %33 = vector.shape_cast %32 : vector<1x8x8xf32> to vector<8x8xf32>
    %c0_45 = arith.constant 0 : index
    %c1_46 = arith.constant 1 : index
    %34 = vector.load %arg6[%c0_45, %c1_46] : memref<8x152xf32, #tpu.memory_space<vmem>>, vector<8x128xf32>
    %cst_47 = arith.constant dense<0.000000e+00> : vector<8x128xf32>
    %35 = tpu.matmul %33, %34, %cst_47 {dimension_numbers = #tpu.dot_dimension_numbers<[1], [0], [0], [1], [0, 0, 1, 1], [], []>} : vector<8x8xf32>, vector<8x128xf32>, vector<8x128xf32> -> vector<8x128xf32>
    %36 = arith.addf %31, %35 : vector<8x128xf32>
    %c2_48 = arith.constant 2 : index
    %c0_49 = arith.constant 0 : index
    %c0_50 = arith.constant 0 : index
    %37 = vector.load %arg1[%c2_48, %c0_49, %c0_50] : memref<9x8x8xf32, #tpu.memory_space<vmem>>, vector<1x8x8xf32>
    %38 = vector.shape_cast %37 : vector<1x8x8xf32> to vector<8x8xf32>
    %c0_51 = arith.constant 0 : index
    %c2_52 = arith.constant 2 : index
    %39 = vector.load %arg6[%c0_51, %c2_52] : memref<8x152xf32, #tpu.memory_space<vmem>>, vector<8x128xf32>
    %cst_53 = arith.constant dense<0.000000e+00> : vector<8x128xf32>
    %40 = tpu.matmul %38, %39, %cst_53 {dimension_numbers = #tpu.dot_dimension_numbers<[1], [0], [0], [1], [0, 0, 1, 1], [], []>} : vector<8x8xf32>, vector<8x128xf32>, vector<8x128xf32> -> vector<8x128xf32>
    %41 = arith.addf %36, %40 : vector<8x128xf32>
    %c3_54 = arith.constant 3 : index
    %c0_55 = arith.constant 0 : index
    %c0_56 = arith.constant 0 : index
    %42 = vector.load %arg1[%c3_54, %c0_55, %c0_56] : memref<9x8x8xf32, #tpu.memory_space<vmem>>, vector<1x8x8xf32>
    %43 = vector.shape_cast %42 : vector<1x8x8xf32> to vector<8x8xf32>
    %c0_57 = arith.constant 0 : index
    %c8 = arith.constant 8 : index
    %44 = vector.load %arg6[%c0_57, %c8] : memref<8x152xf32, #tpu.memory_space<vmem>>, vector<8x128xf32>
    %cst_58 = arith.constant dense<0.000000e+00> : vector<8x128xf32>
    %45 = tpu.matmul %43, %44, %cst_58 {dimension_numbers = #tpu.dot_dimension_numbers<[1], [0], [0], [1], [0, 0, 1, 1], [], []>} : vector<8x8xf32>, vector<8x128xf32>, vector<8x128xf32> -> vector<8x128xf32>
    %46 = arith.addf %41, %45 : vector<8x128xf32>
    %c4 = arith.constant 4 : index
    %c0_59 = arith.constant 0 : index
    %c0_60 = arith.constant 0 : index
    %47 = vector.load %arg1[%c4, %c0_59, %c0_60] : memref<9x8x8xf32, #tpu.memory_space<vmem>>, vector<1x8x8xf32>
    %48 = vector.shape_cast %47 : vector<1x8x8xf32> to vector<8x8xf32>
    %c0_61 = arith.constant 0 : index
    %c9 = arith.constant 9 : index
    %49 = vector.load %arg6[%c0_61, %c9] : memref<8x152xf32, #tpu.memory_space<vmem>>, vector<8x128xf32>
    %cst_62 = arith.constant dense<0.000000e+00> : vector<8x128xf32>
    %50 = tpu.matmul %48, %49, %cst_62 {dimension_numbers = #tpu.dot_dimension_numbers<[1], [0], [0], [1], [0, 0, 1, 1], [], []>} : vector<8x8xf32>, vector<8x128xf32>, vector<8x128xf32> -> vector<8x128xf32>
    %51 = arith.addf %46, %50 : vector<8x128xf32>
    %c5 = arith.constant 5 : index
    %c0_63 = arith.constant 0 : index
    %c0_64 = arith.constant 0 : index
    %52 = vector.load %arg1[%c5, %c0_63, %c0_64] : memref<9x8x8xf32, #tpu.memory_space<vmem>>, vector<1x8x8xf32>
    %53 = vector.shape_cast %52 : vector<1x8x8xf32> to vector<8x8xf32>
    %c0_65 = arith.constant 0 : index
    %c10 = arith.constant 10 : index
    %54 = vector.load %arg6[%c0_65, %c10] : memref<8x152xf32, #tpu.memory_space<vmem>>, vector<8x128xf32>
    %cst_66 = arith.constant dense<0.000000e+00> : vector<8x128xf32>
    %55 = tpu.matmul %53, %54, %cst_66 {dimension_numbers = #tpu.dot_dimension_numbers<[1], [0], [0], [1], [0, 0, 1, 1], [], []>} : vector<8x8xf32>, vector<8x128xf32>, vector<8x128xf32> -> vector<8x128xf32>
    %56 = arith.addf %51, %55 : vector<8x128xf32>
    %c6 = arith.constant 6 : index
    %c0_67 = arith.constant 0 : index
    %c0_68 = arith.constant 0 : index
    %57 = vector.load %arg1[%c6, %c0_67, %c0_68] : memref<9x8x8xf32, #tpu.memory_space<vmem>>, vector<1x8x8xf32>
    %58 = vector.shape_cast %57 : vector<1x8x8xf32> to vector<8x8xf32>
    %c0_69 = arith.constant 0 : index
    %c16 = arith.constant 16 : index
    %59 = vector.load %arg6[%c0_69, %c16] : memref<8x152xf32, #tpu.memory_space<vmem>>, vector<8x128xf32>
    %cst_70 = arith.constant dense<0.000000e+00> : vector<8x128xf32>
    %60 = tpu.matmul %58, %59, %cst_70 {dimension_numbers = #tpu.dot_dimension_numbers<[1], [0], [0], [1], [0, 0, 1, 1], [], []>} : vector<8x8xf32>, vector<8x128xf32>, vector<8x128xf32> -> vector<8x128xf32>
    %61 = arith.addf %56, %60 : vector<8x128xf32>
    %c7 = arith.constant 7 : index
    %c0_71 = arith.constant 0 : index
    %c0_72 = arith.constant 0 : index
    %62 = vector.load %arg1[%c7, %c0_71, %c0_72] : memref<9x8x8xf32, #tpu.memory_space<vmem>>, vector<1x8x8xf32>
    %63 = vector.shape_cast %62 : vector<1x8x8xf32> to vector<8x8xf32>
    %c0_73 = arith.constant 0 : index
    %c17 = arith.constant 17 : index
    %64 = vector.load %arg6[%c0_73, %c17] : memref<8x152xf32, #tpu.memory_space<vmem>>, vector<8x128xf32>
    %cst_74 = arith.constant dense<0.000000e+00> : vector<8x128xf32>
    %65 = tpu.matmul %63, %64, %cst_74 {dimension_numbers = #tpu.dot_dimension_numbers<[1], [0], [0], [1], [0, 0, 1, 1], [], []>} : vector<8x8xf32>, vector<8x128xf32>, vector<8x128xf32> -> vector<8x128xf32>
    %66 = arith.addf %61, %65 : vector<8x128xf32>
    %c8_75 = arith.constant 8 : index
    %c0_76 = arith.constant 0 : index
    %c0_77 = arith.constant 0 : index
    %67 = vector.load %arg1[%c8_75, %c0_76, %c0_77] : memref<9x8x8xf32, #tpu.memory_space<vmem>>, vector<1x8x8xf32>
    %68 = vector.shape_cast %67 : vector<1x8x8xf32> to vector<8x8xf32>
    %c0_78 = arith.constant 0 : index
    %c18 = arith.constant 18 : index
    %69 = vector.load %arg6[%c0_78, %c18] : memref<8x152xf32, #tpu.memory_space<vmem>>, vector<8x128xf32>
    %cst_79 = arith.constant dense<0.000000e+00> : vector<8x128xf32>
    %70 = tpu.matmul %68, %69, %cst_79 {dimension_numbers = #tpu.dot_dimension_numbers<[1], [0], [0], [1], [0, 0, 1, 1], [], []>} : vector<8x8xf32>, vector<8x128xf32>, vector<8x128xf32> -> vector<8x128xf32>
    %71 = arith.addf %66, %70 : vector<8x128xf32>
    %c0_80 = arith.constant 0 : index
    %c0_81 = arith.constant 0 : index
    %72 = vector.load %arg2[%c0_80, %c0_81] : memref<8x1xf32, #tpu.memory_space<vmem>>, vector<8x1xf32>
    %73 = vector.broadcast %72 : vector<8x1xf32> to vector<8x128xf32>
    %74 = arith.addf %71, %73 : vector<8x128xf32>
    %cst_82 = arith.constant 0.000000e+00 : f32
    %75 = vector.broadcast %cst_82 : f32 to vector<8x128xf32>
    %76 = arith.maximumf %74, %75 : vector<8x128xf32>
    %c0_83 = arith.constant 0 : index
    %c0_84 = arith.constant 0 : index
    %77 = vector.load %arg7[%c0_83, %c0_84] : memref<8x152xf32, #tpu.memory_space<vmem>>, vector<8x128xf32>
    tpu.vector_store %arg7[%c0_83, %c0_84], %76 {strides = array<i32>} : memref<8x152xf32, #tpu.memory_space<vmem>>, vector<8x128xf32>,
    %c0_85 = arith.constant 0 : index
    %c0_86 = arith.constant 0 : index
    %c0_87 = arith.constant 0 : index
    %78 = vector.load %arg3[%c0_85, %c0_86, %c0_87] : memref<9x8x8xf32, #tpu.memory_space<vmem>>, vector<1x8x8xf32>
    %79 = vector.shape_cast %78 : vector<1x8x8xf32> to vector<8x8xf32>
    %c0_88 = arith.constant 0 : index
    %c0_89 = arith.constant 0 : index
    %80 = vector.load %arg7[%c0_88, %c0_89] : memref<8x152xf32, #tpu.memory_space<vmem>>, vector<8x128xf32>
    %cst_90 = arith.constant dense<0.000000e+00> : vector<8x128xf32>
    %81 = tpu.matmul %79, %80, %cst_90 {dimension_numbers = #tpu.dot_dimension_numbers<[1], [0], [0], [1], [0, 0, 1, 1], [], []>} : vector<8x8xf32>, vector<8x128xf32>, vector<8x128xf32> -> vector<8x128xf32>
    %c1_91 = arith.constant 1 : index
    %c0_92 = arith.constant 0 : index
    %c0_93 = arith.constant 0 : index
    %82 = vector.load %arg3[%c1_91, %c0_92, %c0_93] : memref<9x8x8xf32, #tpu.memory_space<vmem>>, vector<1x8x8xf32>
    %83 = vector.shape_cast %82 : vector<1x8x8xf32> to vector<8x8xf32>
    %c0_94 = arith.constant 0 : index
    %c1_95 = arith.constant 1 : index
    %84 = vector.load %arg7[%c0_94, %c1_95] : memref<8x152xf32, #tpu.memory_space<vmem>>, vector<8x128xf32>
    %cst_96 = arith.constant dense<0.000000e+00> : vector<8x128xf32>
    %85 = tpu.matmul %83, %84, %cst_96 {dimension_numbers = #tpu.dot_dimension_numbers<[1], [0], [0], [1], [0, 0, 1, 1], [], []>} : vector<8x8xf32>, vector<8x128xf32>, vector<8x128xf32> -> vector<8x128xf32>
    %86 = arith.addf %81, %85 : vector<8x128xf32>
    %c2_97 = arith.constant 2 : index
    %c0_98 = arith.constant 0 : index
    %c0_99 = arith.constant 0 : index
    %87 = vector.load %arg3[%c2_97, %c0_98, %c0_99] : memref<9x8x8xf32, #tpu.memory_space<vmem>>, vector<1x8x8xf32>
    %88 = vector.shape_cast %87 : vector<1x8x8xf32> to vector<8x8xf32>
    %c0_100 = arith.constant 0 : index
    %c2_101 = arith.constant 2 : index
    %89 = vector.load %arg7[%c0_100, %c2_101] : memref<8x152xf32, #tpu.memory_space<vmem>>, vector<8x128xf32>
    %cst_102 = arith.constant dense<0.000000e+00> : vector<8x128xf32>
    %90 = tpu.matmul %88, %89, %cst_102 {dimension_numbers = #tpu.dot_dimension_numbers<[1], [0], [0], [1], [0, 0, 1, 1], [], []>} : vector<8x8xf32>, vector<8x128xf32>, vector<8x128xf32> -> vector<8x128xf32>
    %91 = arith.addf %86, %90 : vector<8x128xf32>
    %c3_103 = arith.constant 3 : index
    %c0_104 = arith.constant 0 : index
    %c0_105 = arith.constant 0 : index
    %92 = vector.load %arg3[%c3_103, %c0_104, %c0_105] : memref<9x8x8xf32, #tpu.memory_space<vmem>>, vector<1x8x8xf32>
    %93 = vector.shape_cast %92 : vector<1x8x8xf32> to vector<8x8xf32>
    %c0_106 = arith.constant 0 : index
    %c8_107 = arith.constant 8 : index
    %94 = vector.load %arg7[%c0_106, %c8_107] : memref<8x152xf32, #tpu.memory_space<vmem>>, vector<8x128xf32>
    %cst_108 = arith.constant dense<0.000000e+00> : vector<8x128xf32>
    %95 = tpu.matmul %93, %94, %cst_108 {dimension_numbers = #tpu.dot_dimension_numbers<[1], [0], [0], [1], [0, 0, 1, 1], [], []>} : vector<8x8xf32>, vector<8x128xf32>, vector<8x128xf32> -> vector<8x128xf32>
    %96 = arith.addf %91, %95 : vector<8x128xf32>
    %c4_109 = arith.constant 4 : index
    %c0_110 = arith.constant 0 : index
    %c0_111 = arith.constant 0 : index
    %97 = vector.load %arg3[%c4_109, %c0_110, %c0_111] : memref<9x8x8xf32, #tpu.memory_space<vmem>>, vector<1x8x8xf32>
    %98 = vector.shape_cast %97 : vector<1x8x8xf32> to vector<8x8xf32>
    %c0_112 = arith.constant 0 : index
    %c9_113 = arith.constant 9 : index
    %99 = vector.load %arg7[%c0_112, %c9_113] : memref<8x152xf32, #tpu.memory_space<vmem>>, vector<8x128xf32>
    %cst_114 = arith.constant dense<0.000000e+00> : vector<8x128xf32>
    %100 = tpu.matmul %98, %99, %cst_114 {dimension_numbers = #tpu.dot_dimension_numbers<[1], [0], [0], [1], [0, 0, 1, 1], [], []>} : vector<8x8xf32>, vector<8x128xf32>, vector<8x128xf32> -> vector<8x128xf32>
    %101 = arith.addf %96, %100 : vector<8x128xf32>
    %c5_115 = arith.constant 5 : index
    %c0_116 = arith.constant 0 : index
    %c0_117 = arith.constant 0 : index
    %102 = vector.load %arg3[%c5_115, %c0_116, %c0_117] : memref<9x8x8xf32, #tpu.memory_space<vmem>>, vector<1x8x8xf32>
    %103 = vector.shape_cast %102 : vector<1x8x8xf32> to vector<8x8xf32>
    %c0_118 = arith.constant 0 : index
    %c10_119 = arith.constant 10 : index
    %104 = vector.load %arg7[%c0_118, %c10_119] : memref<8x152xf32, #tpu.memory_space<vmem>>, vector<8x128xf32>
    %cst_120 = arith.constant dense<0.000000e+00> : vector<8x128xf32>
    %105 = tpu.matmul %103, %104, %cst_120 {dimension_numbers = #tpu.dot_dimension_numbers<[1], [0], [0], [1], [0, 0, 1, 1], [], []>} : vector<8x8xf32>, vector<8x128xf32>, vector<8x128xf32> -> vector<8x128xf32>
    %106 = arith.addf %101, %105 : vector<8x128xf32>
    %c6_121 = arith.constant 6 : index
    %c0_122 = arith.constant 0 : index
    %c0_123 = arith.constant 0 : index
    %107 = vector.load %arg3[%c6_121, %c0_122, %c0_123] : memref<9x8x8xf32, #tpu.memory_space<vmem>>, vector<1x8x8xf32>
    %108 = vector.shape_cast %107 : vector<1x8x8xf32> to vector<8x8xf32>
    %c0_124 = arith.constant 0 : index
    %c16_125 = arith.constant 16 : index
    %109 = vector.load %arg7[%c0_124, %c16_125] : memref<8x152xf32, #tpu.memory_space<vmem>>, vector<8x128xf32>
    %cst_126 = arith.constant dense<0.000000e+00> : vector<8x128xf32>
    %110 = tpu.matmul %108, %109, %cst_126 {dimension_numbers = #tpu.dot_dimension_numbers<[1], [0], [0], [1], [0, 0, 1, 1], [], []>} : vector<8x8xf32>, vector<8x128xf32>, vector<8x128xf32> -> vector<8x128xf32>
    %111 = arith.addf %106, %110 : vector<8x128xf32>
    %c7_127 = arith.constant 7 : index
    %c0_128 = arith.constant 0 : index
    %c0_129 = arith.constant 0 : index
    %112 = vector.load %arg3[%c7_127, %c0_128, %c0_129] : memref<9x8x8xf32, #tpu.memory_space<vmem>>, vector<1x8x8xf32>
    %113 = vector.shape_cast %112 : vector<1x8x8xf32> to vector<8x8xf32>
    %c0_130 = arith.constant 0 : index
    %c17_131 = arith.constant 17 : index
    %114 = vector.load %arg7[%c0_130, %c17_131] : memref<8x152xf32, #tpu.memory_space<vmem>>, vector<8x128xf32>
    %cst_132 = arith.constant dense<0.000000e+00> : vector<8x128xf32>
    %115 = tpu.matmul %113, %114, %cst_132 {dimension_numbers = #tpu.dot_dimension_numbers<[1], [0], [0], [1], [0, 0, 1, 1], [], []>} : vector<8x8xf32>, vector<8x128xf32>, vector<8x128xf32> -> vector<8x128xf32>
    %116 = arith.addf %111, %115 : vector<8x128xf32>
    %c8_133 = arith.constant 8 : index
    %c0_134 = arith.constant 0 : index
    %c0_135 = arith.constant 0 : index
    %117 = vector.load %arg3[%c8_133, %c0_134, %c0_135] : memref<9x8x8xf32, #tpu.memory_space<vmem>>, vector<1x8x8xf32>
    %118 = vector.shape_cast %117 : vector<1x8x8xf32> to vector<8x8xf32>
    %c0_136 = arith.constant 0 : index
    %c18_137 = arith.constant 18 : index
    %119 = vector.load %arg7[%c0_136, %c18_137] : memref<8x152xf32, #tpu.memory_space<vmem>>, vector<8x128xf32>
    %cst_138 = arith.constant dense<0.000000e+00> : vector<8x128xf32>
    %120 = tpu.matmul %118, %119, %cst_138 {dimension_numbers = #tpu.dot_dimension_numbers<[1], [0], [0], [1], [0, 0, 1, 1], [], []>} : vector<8x8xf32>, vector<8x128xf32>, vector<8x128xf32> -> vector<8x128xf32>
    %121 = arith.addf %116, %120 : vector<8x128xf32>
    %c0_139 = arith.constant 0 : index
    %c0_140 = arith.constant 0 : index
    %122 = vector.load %arg4[%c0_139, %c0_140] : memref<8x1xf32, #tpu.memory_space<vmem>>, vector<8x1xf32>
    %123 = vector.broadcast %122 : vector<8x1xf32> to vector<8x128xf32>
    %124 = arith.addf %121, %123 : vector<8x128xf32>
    %cst_141 = arith.constant 0.000000e+00 : f32
    %125 = vector.broadcast %cst_141 : f32 to vector<8x128xf32>
    %126 = arith.maximumf %124, %125 : vector<8x128xf32>
    %c0_142 = arith.constant 0 : index
    %c0_143 = arith.constant 0 : index
    %127 = vector.load %arg5[%c0_142, %c0_143] : memref<8x128xf32, #tpu.memory_space<vmem>>, vector<8x128xf32>
    tpu.vector_store %arg5[%c0_142, %c0_143], %126 {strides = array<i32>} : memref<8x128xf32, #tpu.memory_space<vmem>>, vector<8x128xf32>,
    return
  }
}

</mosaic_0001>

<llo_original>
// kernel: tpu_custom_call.1
$region0: #{tpu_custom_call.1}
  #allocation0 [shape = 'u32[]', space=smem, size = 0x4, offset = 0x4, fixed_abs, tag = 'smem constant byte address 0x4 - core index']
  #allocation1 [shape = 'u32[144,128]{1,0:T(1,128)}', space=vmem, size = 0x12000, scoped, tag = 'internal scratch']
  #allocation2 [shape = 'f32[8,152]{1,0:T(8,128)}', space=vmem, size = 0x2000, scoped, tag = 'scratch operand']
  #allocation3 [shape = 'f32[8,152]{1,0:T(8,128)}', space=vmem, size = 0x2000, scoped, tag = 'scratch operand']
  %s0 = inlined_call_operand.vmem [shape: f32[4,2,4,64], index: 0, kind: input, shape index: {}]
  %s1 = inlined_call_operand.vmem [shape: f32[9,8,8], index: 1, kind: input, shape index: {}]
  %s2 = inlined_call_operand.vmem [shape: f32[8,1], index: 2, kind: input, shape index: {}]
  %s3 = inlined_call_operand.vmem [shape: f32[9,8,8], index: 3, kind: input, shape index: {}]
  %s4 = inlined_call_operand.vmem [shape: f32[8,1], index: 4, kind: input, shape index: {}]
  %s5 = inlined_call_operand.hbm [shape: f32[8,128], index: 5, kind: output, shape index: {}]
  %s6 = sld [smem:[#allocation0]]
  $region30: #{tpu_custom_call.1} parent=0
    _
  %s8 = ssub.s32 1, %s6
  %s9 = scalar_select 0, %s8, %s6
  $region1: #{tpu_custom_call.1} parent=0
    #allocation4 [shape = 'u8[4096]{0}', space=vmem, size = 0x1000, scoped, tag = 'output window, operand 0, single buffered']
    #allocation5 [shape = 's32[1]{0}', space=sflag, size = 0x4, scoped, tag = 'scoped memory for tpu_custom_call.1']
    %10 = vsyncpa [#allocation5], 0
    // Predicated region
    $region2: #{tpu_custom_call.1} parent=1 // pred_check
      _
    $region3: #{tpu_custom_call.1} parent=1 // pred_check_branch
      %12 = sbr.rel (0) target = $region5
    $region4: #{tpu_custom_call.1} parent=1 // pred_region
      _
    $region5: #{tpu_custom_call.1} parent=1 // pred_fallthru
      _
    // Predicated region
    $region6: #{tpu_custom_call.1} parent=1 // pred_check
      _
    $region7: #{tpu_custom_call.1} parent=1 // pred_check_branch
      %14 = sbr.rel (0) target = $region9
    $region8: #{tpu_custom_call.1} parent=1 // pred_region
      _
    $region9: #{tpu_custom_call.1} parent=1 // pred_fallthru
      _
    // Predicated region
    $region10: #{tpu_custom_call.1} parent=1 // pred_check
      _
    $region11: #{tpu_custom_call.1} parent=1 // pred_check_branch
      %16 = sbr.rel (0) target = $region13
    $region12: #{tpu_custom_call.1} parent=1 // pred_region
      _
    $region13: #{tpu_custom_call.1} parent=1 // pred_fallthru
      _
    // Predicated region
    $region14: #{tpu_custom_call.1} parent=1 // pred_check
      _
    $region15: #{tpu_custom_call.1} parent=1 // pred_check_branch
      %18 = sbr.rel (0) target = $region17
    $region16: #{tpu_custom_call.1} parent=1 // pred_region
      _
    $region17: #{tpu_custom_call.1} parent=1 // pred_fallthru
      _
    // Predicated region
    $region18: #{tpu_custom_call.1} parent=1 // pred_check
      _
    $region19: #{tpu_custom_call.1} parent=1 // pred_check_branch
      %20 = sbr.rel (0) target = $region21
    $region20: #{tpu_custom_call.1} parent=1 // pred_region
      _
    $region21: #{tpu_custom_call.1} parent=1 // pred_fallthru
      _
    %21 = vst [vmem:[#allocation2] sm:$0xff] 0.0
    %vm22 = vcmask 195584
    %23 = vst.msk [vmem:[#allocation2 + $0x8] sm:$0xff] %vm22, 0.0
    %24 = vst [vmem:[#allocation3] sm:$0xff] 0.0
    %25 = vst.msk [vmem:[#allocation3 + $0x8] sm:$0xff] %vm22, 0.0
    %v26 = vld [vmem:[%s0] sm:$0xf]
    %s27 = scalar_lea.vmem %s0, 8
    %v28 = vld [vmem:[%s27] sm:$0xf]
    %v29 = vmax.f32 %v26, %v28
    %s30 = scalar_lea.vmem %s0, 16
    %v31 = vld [vmem:[%s30] sm:$0xf]
    %s32 = scalar_lea.vmem %s0, 24
    %v33 = vld [vmem:[%s32] sm:$0xf]
    %v34 = vmax.f32 %v31, %v33
    %v35 = vmax.f32 %v29, %v34
    %vm36 = vcmask 519168
    %37 = vst.msk [vmem:[#allocation2] sm:$0xf] %vm36, %v35
    %s38 = scalar_lea.vmem %s0, 4
    %v39 = vld [vmem:[%s38] sm:$0xf]
    %s40 = scalar_lea.vmem %s0, 12
    %v41 = vld [vmem:[%s40] sm:$0xf]
    %v42 = vmax.f32 %v39, %v41
    %s43 = scalar_lea.vmem %s0, 20
    %v44 = vld [vmem:[%s43] sm:$0xf]
    %s45 = scalar_lea.vmem %s0, 28
    %v46 = vld [vmem:[%s45] sm:$0xf]
    %v47 = vmax.f32 %v44, %v46
    %v48 = vmax.f32 %v42, %v47
    %50 = vrot.lane.b32.xlu0 %v48, 64
    %v51 = vpop.permute.xlu0 %50
    %vm53 = vcmask 1043968
    %54 = vst.msk [vmem:[#allocation2] sm:$0xf] %vm53, %v51
    %v55 = vld [vmem:[%s1] sm:$0xff]
    %v56 = vld [vmem:[#allocation2] sm:$0xff]
    %s57 = scalar_lea.vmem %s1, 8
    %v58 = vld [vmem:[%s57] sm:$0xff]
    %v59 = vld [vmem:[#allocation2 + $0x8] sm:$0xff]
    %62 = vrot.lane.b32.xlu0 %v56, 127
    %v63 = vpop.permute.xlu0 %62
    %64 = vrot.lane.b32.xlu0 %v59, 127
    %v65 = vpop.permute.xlu0 %64
    %vm66 = vcmask 1039360
    %v67 = vsel %vm66, %v63, %v65
    %vm69 = vcmask 64512
    %v71 = vsel %vm69, %v58, 0
    %73 = vmatprep.subr.mxu0 0.0
    %74 = vmatpush1.msra.mxu0 0.0
    %75 = vmatprep.subr.mxu0 0.0
    %76 = vmatpush1.msra.mxu0 0.0
    %77 = vmatprep.subr.mxu0 0.0
    %78 = vmatpush1.msra.mxu0 0.0
    %79 = vmatprep.subr.mxu0 0.0
    %80 = vmatpush1.msra.mxu0 0.0
    %81 = vmatprep.subr.mxu0 0.0
    %82 = vmatpush1.msra.mxu0 0.0
    %83 = vmatprep.subr.mxu0 0.0
    %84 = vmatpush1.msra.mxu0 0.0
    %85 = vmatprep.subr.mxu0 0.0
    %86 = vmatpush1.msra.mxu0 0.0
    %87 = vmatprep.subr.mxu0 0.0
    %88 = vmatpush1.msra.mxu0 0.0
    %89 = vmatprep.subr.mxu0 0.0
    %90 = vmatpush1.msra.mxu0 0.0
    %91 = vmatprep.subr.mxu0 0.0
    %92 = vmatpush1.msra.mxu0 0.0
    %93 = vmatprep.subr.mxu0 0.0
    %94 = vmatpush1.msra.mxu0 0.0
    %95 = vmatprep.subr.mxu0 0.0
    %96 = vmatpush1.msra.mxu0 0.0
    %97 = vmatprep.subr.mxu0 0.0
    %98 = vmatpush1.msra.mxu0 0.0
    %99 = vmatprep.subr.mxu0 0.0
    %100 = vmatpush1.msra.mxu0 0.0
    %101 = vmatprep.subr.mxu0 0.0
    %102 = vmatpush1.msra.mxu0 0.0
    %103 = vmatprep.subr.mxu0 0.0
    %104 = vmatpush1.msra.mxu0 %v67
    %105 = vmatprep.subr.mxu0 0.0
    %106 = vmatpush2.msra.mxu0 0.0
    %107 = vmatprep.subr.mxu0 0.0
    %108 = vmatpush2.msra.mxu0 0.0
    %109 = vmatprep.subr.mxu0 0.0
    %110 = vmatpush2.msra.mxu0 0.0
    %111 = vmatprep.subr.mxu0 0.0
    %112 = vmatpush2.msra.mxu0 0.0
    %113 = vmatprep.subr.mxu0 0.0
    %114 = vmatpush2.msra.mxu0 0.0
    %115 = vmatprep.subr.mxu0 0.0
    %116 = vmatpush2.msra.mxu0 0.0
    %117 = vmatprep.subr.mxu0 0.0
    %118 = vmatpush2.msra.mxu0 0.0
    %119 = vmatprep.subr.mxu0 0.0
    %120 = vmatpush2.msra.mxu0 0.0
    %121 = vmatprep.subr.mxu0 0.0
    %122 = vmatpush2.msra.mxu0 0.0
    %123 = vmatprep.subr.mxu0 0.0
    %124 = vmatpush2.msra.mxu0 0.0
    %125 = vmatprep.subr.mxu0 0.0
    %126 = vmatpush2.msra.mxu0 0.0
    %127 = vmatprep.subr.mxu0 0.0
    %128 = vmatpush2.msra.mxu0 0.0
    %129 = vmatprep.subr.mxu0 0.0
    %130 = vmatpush2.msra.mxu0 0.0
    %131 = vmatprep.subr.mxu0 0.0
    %132 = vmatpush2.msra.mxu0 0.0
    %133 = vmatprep.subr.mxu0 0.0
    %134 = vmatpush2.msra.mxu0 0.0
    %135 = vmatprep.subr.mxu0 0.0
    %136 = vmatpush2.msra.mxu0 0.0
    %137 = vmatprep.mubr.f32.mxu0 0.0
    %138 = vmatmul.mubr.f32.gmra.mxu0 %v71
    %v139 = vpop.f32.mrf.mxu0
    %v140 = vadd.f32 0.0, %v139
    %v141 = vpop.f32.mrf.mxu0
    %142 = vdwg.mxu0
    %v144 = vsel %vm69, %v55, 0
    %146 = vmatprep.subr.mxu0 0.0
    %147 = vmatpush1.msra.mxu0 0.0
    %148 = vmatprep.subr.mxu0 0.0
    %149 = vmatpush1.msra.mxu0 0.0
    %150 = vmatprep.subr.mxu0 0.0
    %151 = vmatpush1.msra.mxu0 0.0
    %152 = vmatprep.subr.mxu0 0.0
    %153 = vmatpush1.msra.mxu0 0.0
    %154 = vmatprep.subr.mxu0 0.0
    %155 = vmatpush1.msra.mxu0 0.0
    %156 = vmatprep.subr.mxu0 0.0
    %157 = vmatpush1.msra.mxu0 0.0
    %158 = vmatprep.subr.mxu0 0.0
    %159 = vmatpush1.msra.mxu0 0.0
    %160 = vmatprep.subr.mxu0 0.0
    %161 = vmatpush1.msra.mxu0 0.0
    %162 = vmatprep.subr.mxu0 0.0
    %163 = vmatpush1.msra.mxu0 0.0
    %164 = vmatprep.subr.mxu0 0.0
    %165 = vmatpush1.msra.mxu0 0.0
    %166 = vmatprep.subr.mxu0 0.0
    %167 = vmatpush1.msra.mxu0 0.0
    %168 = vmatprep.subr.mxu0 0.0
    %169 = vmatpush1.msra.mxu0 0.0
    %170 = vmatprep.subr.mxu0 0.0
    %171 = vmatpush1.msra.mxu0 0.0
    %172 = vmatprep.subr.mxu0 0.0
    %173 = vmatpush1.msra.mxu0 0.0
    %174 = vmatprep.subr.mxu0 0.0
    %175 = vmatpush1.msra.mxu0 0.0
    %176 = vmatprep.subr.mxu0 0.0
    %177 = vmatpush1.msra.mxu0 %v56
    %178 = vmatprep.subr.mxu0 0.0
    %179 = vmatpush2.msra.mxu0 0.0
    %180 = vmatprep.subr.mxu0 0.0
    %181 = vmatpush2.msra.mxu0 0.0
    %182 = vmatprep.subr.mxu0 0.0
    %183 = vmatpush2.msra.mxu0 0.0
    %184 = vmatprep.subr.mxu0 0.0
    %185 = vmatpush2.msra.mxu0 0.0
    %186 = vmatprep.subr.mxu0 0.0
    %187 = vmatpush2.msra.mxu0 0.0
    %188 = vmatprep.subr.mxu0 0.0
    %189 = vmatpush2.msra.mxu0 0.0
    %190 = vmatprep.subr.mxu0 0.0
    %191 = vmatpush2.msra.mxu0 0.0
    %192 = vmatprep.subr.mxu0 0.0
    %193 = vmatpush2.msra.mxu0 0.0
    %194 = vmatprep.subr.mxu0 0.0
    %195 = vmatpush2.msra.mxu0 0.0
    %196 = vmatprep.subr.mxu0 0.0
    %197 = vmatpush2.msra.mxu0 0.0
    %198 = vmatprep.subr.mxu0 0.0
    %199 = vmatpush2.msra.mxu0 0.0
    %200 = vmatprep.subr.mxu0 0.0
    %201 = vmatpush2.msra.mxu0 0.0
    %202 = vmatprep.subr.mxu0 0.0
    %203 = vmatpush2.msra.mxu0 0.0
    %204 = vmatprep.subr.mxu0 0.0
    %205 = vmatpush2.msra.mxu0 0.0
    %206 = vmatprep.subr.mxu0 0.0
    %207 = vmatpush2.msra.mxu0 0.0
    %208 = vmatprep.subr.mxu0 0.0
    %209 = vmatpush2.msra.mxu0 0.0
    %210 = vmatprep.mubr.f32.mxu0 0.0
    %211 = vmatmul.mubr.f32.gmra.mxu0 %v144
    %v212 = vpop.f32.mrf.mxu0
    %v213 = vadd.f32 %v140, %v212
    %v214 = vpop.f32.mrf.mxu0
    %215 = vdwg.mxu0
    %s216 = scalar_lea.vmem %s1, 16
    %v217 = vld [vmem:[%s216] sm:$0xff]
    %218 = vrot.lane.b32.xlu0 %v56, 126
    %v219 = vpop.permute.xlu0 %218
    %220 = vrot.lane.b32.xlu0 %v59, 126
    %v221 = vpop.permute.xlu0 %220
    %vm222 = vcmask 1031168
    %v223 = vsel %vm222, %v219, %v221
    %v226 = vsel %vm69, %v217, 0
    %228 = vmatprep.subr.mxu0 0.0
    %229 = vmatpush1.msra.mxu0 0.0
    %230 = vmatprep.subr.mxu0 0.0
    %231 = vmatpush1.msra.mxu0 0.0
    %232 = vmatprep.subr.mxu0 0.0
    %233 = vmatpush1.msra.mxu0 0.0
    %234 = vmatprep.subr.mxu0 0.0
    %235 = vmatpush1.msra.mxu0 0.0
    %236 = vmatprep.subr.mxu0 0.0
    %237 = vmatpush1.msra.mxu0 0.0
    %238 = vmatprep.subr.mxu0 0.0
    %239 = vmatpush1.msra.mxu0 0.0
    %240 = vmatprep.subr.mxu0 0.0
    %241 = vmatpush1.msra.mxu0 0.0
    %242 = vmatprep.subr.mxu0 0.0
    %243 = vmatpush1.msra.mxu0 0.0
    %244 = vmatprep.subr.mxu0 0.0
    %245 = vmatpush1.msra.mxu0 0.0
    %246 = vmatprep.subr.mxu0 0.0
    %247 = vmatpush1.msra.mxu0 0.0
    %248 = vmatprep.subr.mxu0 0.0
    %249 = vmatpush1.msra.mxu0 0.0
    %250 = vmatprep.subr.mxu0 0.0
    %251 = vmatpush1.msra.mxu0 0.0
    %252 = vmatprep.subr.mxu0 0.0
    %253 = vmatpush1.msra.mxu0 0.0
    %254 = vmatprep.subr.mxu0 0.0
    %255 = vmatpush1.msra.mxu0 0.0
    %256 = vmatprep.subr.mxu0 0.0
    %257 = vmatpush1.msra.mxu0 0.0
    %258 = vmatprep.subr.mxu0 0.0
    %259 = vmatpush1.msra.mxu0 %v223
    %260 = vmatprep.subr.mxu0 0.0
    %261 = vmatpush2.msra.mxu0 0.0
    %262 = vmatprep.subr.mxu0 0.0
    %263 = vmatpush2.msra.mxu0 0.0
    %264 = vmatprep.subr.mxu0 0.0
    %265 = vmatpush2.msra.mxu0 0.0
    %266 = vmatprep.subr.mxu0 0.0
    %267 = vmatpush2.msra.mxu0 0.0
    %268 = vmatprep.subr.mxu0 0.0
    %269 = vmatpush2.msra.mxu0 0.0
    %270 = vmatprep.subr.mxu0 0.0
    %271 = vmatpush2.msra.mxu0 0.0
    %272 = vmatprep.subr.mxu0 0.0
    %273 = vmatpush2.msra.mxu0 0.0
    %274 = vmatprep.subr.mxu0 0.0
    %275 = vmatpush2.msra.mxu0 0.0
    %276 = vmatprep.subr.mxu0 0.0
    %277 = vmatpush2.msra.mxu0 0.0
    %278 = vmatprep.subr.mxu0 0.0
    %279 = vmatpush2.msra.mxu0 0.0
    %280 = vmatprep.subr.mxu0 0.0
    %281 = vmatpush2.msra.mxu0 0.0
    %282 = vmatprep.subr.mxu0 0.0
    %283 = vmatpush2.msra.mxu0 0.0
    %284 = vmatprep.subr.mxu0 0.0
    %285 = vmatpush2.msra.mxu0 0.0
    %286 = vmatprep.subr.mxu0 0.0
    %287 = vmatpush2.msra.mxu0 0.0
    %288 = vmatprep.subr.mxu0 0.0
    %289 = vmatpush2.msra.mxu0 0.0
    %290 = vmatprep.subr.mxu0 0.0
    %291 = vmatpush2.msra.mxu0 0.0
    %292 = vmatprep.mubr.f32.mxu0 0.0
    %293 = vmatmul.mubr.f32.gmra.mxu0 %v226
    %v294 = vpop.f32.mrf.mxu0
    %v295 = vadd.f32 0.0, %v294
    %v296 = vpop.f32.mrf.mxu0
    %297 = vdwg.mxu0
    %v298 = vadd.f32 %v213, %v295
    %s299 = scalar_lea.vmem %s1, 24
    %v300 = vld [vmem:[%s299] sm:$0xff]
    %301 = vrot.lane.b32.xlu0 %v56, 120
    %v302 = vpop.permute.xlu0 %301
    %303 = vrot.lane.b32.xlu0 %v59, 120
    %v304 = vpop.permute.xlu0 %303
    %vm305 = vcmask 982016
    %v306 = vsel %vm305, %v302, %v304
    %v309 = vsel %vm69, %v300, 0
    %311 = vmatprep.subr.mxu0 0.0
    %312 = vmatpush1.msra.mxu0 0.0
    %313 = vmatprep.subr.mxu0 0.0
    %314 = vmatpush1.msra.mxu0 0.0
    %315 = vmatprep.subr.mxu0 0.0
    %316 = vmatpush1.msra.mxu0 0.0
    %317 = vmatprep.subr.mxu0 0.0
    %318 = vmatpush1.msra.mxu0 0.0
    %319 = vmatprep.subr.mxu0 0.0
    %320 = vmatpush1.msra.mxu0 0.0
    %321 = vmatprep.subr.mxu0 0.0
    %322 = vmatpush1.msra.mxu0 0.0
    %323 = vmatprep.subr.mxu0 0.0
    %324 = vmatpush1.msra.mxu0 0.0
    %325 = vmatprep.subr.mxu0 0.0
    %326 = vmatpush1.msra.mxu0 0.0
    %327 = vmatprep.subr.mxu0 0.0
    %328 = vmatpush1.msra.mxu0 0.0
    %329 = vmatprep.subr.mxu0 0.0
    %330 = vmatpush1.msra.mxu0 0.0
    %331 = vmatprep.subr.mxu0 0.0
    %332 = vmatpush1.msra.mxu0 0.0
    %333 = vmatprep.subr.mxu0 0.0
    %334 = vmatpush1.msra.mxu0 0.0
    %335 = vmatprep.subr.mxu0 0.0
    %336 = vmatpush1.msra.mxu0 0.0
    %337 = vmatprep.subr.mxu0 0.0
    %338 = vmatpush1.msra.mxu0 0.0
    %339 = vmatprep.subr.mxu0 0.0
    %340 = vmatpush1.msra.mxu0 0.0
    %341 = vmatprep.subr.mxu0 0.0
    %342 = vmatpush1.msra.mxu0 %v306
    %343 = vmatprep.subr.mxu0 0.0
    %344 = vmatpush2.msra.mxu0 0.0
    %345 = vmatprep.subr.mxu0 0.0
    %346 = vmatpush2.msra.mxu0 0.0
    %347 = vmatprep.subr.mxu0 0.0
    %348 = vmatpush2.msra.mxu0 0.0
    %349 = vmatprep.subr.mxu0 0.0
    %350 = vmatpush2.msra.mxu0 0.0
    %351 = vmatprep.subr.mxu0 0.0
    %352 = vmatpush2.msra.mxu0 0.0
    %353 = vmatprep.subr.mxu0 0.0
    %354 = vmatpush2.msra.mxu0 0.0
    %355 = vmatprep.subr.mxu0 0.0
    %356 = vmatpush2.msra.mxu0 0.0
    %357 = vmatprep.subr.mxu0 0.0
    %358 = vmatpush2.msra.mxu0 0.0
    %359 = vmatprep.subr.mxu0 0.0
    %360 = vmatpush2.msra.mxu0 0.0
    %361 = vmatprep.subr.mxu0 0.0
    %362 = vmatpush2.msra.mxu0 0.0
    %363 = vmatprep.subr.mxu0 0.0
    %364 = vmatpush2.msra.mxu0 0.0
    %365 = vmatprep.subr.mxu0 0.0
    %366 = vmatpush2.msra.mxu0 0.0
    %367 = vmatprep.subr.mxu0 0.0
    %368 = vmatpush2.msra.mxu0 0.0
    %369 = vmatprep.subr.mxu0 0.0
    %370 = vmatpush2.msra.mxu0 0.0
    %371 = vmatprep.subr.mxu0 0.0
    %372 = vmatpush2.msra.mxu0 0.0
    %373 = vmatprep.subr.mxu0 0.0
    %374 = vmatpush2.msra.mxu0 0.0
    %375 = vmatprep.mubr.f32.mxu0 0.0
    %376 = vmatmul.mubr.f32.gmra.mxu0 %v309
    %v377 = vpop.f32.mrf.mxu0
    %v378 = vadd.f32 0.0, %v377
    %v379 = vpop.f32.mrf.mxu0
    %380 = vdwg.mxu0
    %v381 = vadd.f32 %v298, %v378
    %s382 = scalar_lea.vmem %s1, 32
    %v383 = vld [vmem:[%s382] sm:$0xff]
    %384 = vrot.lane.b32.xlu0 %v56, 119
    %v385 = vpop.permute.xlu0 %384
    %386 = vrot.lane.b32.xlu0 %v59, 119
    %v387 = vpop.permute.xlu0 %386
    %vm388 = vcmask 973824
    %v389 = vsel %vm388, %v385, %v387
    %v392 = vsel %vm69, %v383, 0
    %394 = vmatprep.subr.mxu0 0.0
    %395 = vmatpush1.msra.mxu0 0.0
    %396 = vmatprep.subr.mxu0 0.0
    %397 = vmatpush1.msra.mxu0 0.0
    %398 = vmatprep.subr.mxu0 0.0
    %399 = vmatpush1.msra.mxu0 0.0
    %400 = vmatprep.subr.mxu0 0.0
    %401 = vmatpush1.msra.mxu0 0.0
    %402 = vmatprep.subr.mxu0 0.0
    %403 = vmatpush1.msra.mxu0 0.0
    %404 = vmatprep.subr.mxu0 0.0
    %405 = vmatpush1.msra.mxu0 0.0
    %406 = vmatprep.subr.mxu0 0.0
    %407 = vmatpush1.msra.mxu0 0.0
    %408 = vmatprep.subr.mxu0 0.0
    %409 = vmatpush1.msra.mxu0 0.0
    %410 = vmatprep.subr.mxu0 0.0
    %411 = vmatpush1.msra.mxu0 0.0
    %412 = vmatprep.subr.mxu0 0.0
    %413 = vmatpush1.msra.mxu0 0.0
    %414 = vmatprep.subr.mxu0 0.0
    %415 = vmatpush1.msra.mxu0 0.0
    %416 = vmatprep.subr.mxu0 0.0
    %417 = vmatpush1.msra.mxu0 0.0
    %418 = vmatprep.subr.mxu0 0.0
    %419 = vmatpush1.msra.mxu0 0.0
    %420 = vmatprep.subr.mxu0 0.0
    %421 = vmatpush1.msra.mxu0 0.0
    %422 = vmatprep.subr.mxu0 0.0
    %423 = vmatpush1.msra.mxu0 0.0
    %424 = vmatprep.subr.mxu0 0.0
    %425 = vmatpush1.msra.mxu0 %v389
    %426 = vmatprep.subr.mxu0 0.0
    %427 = vmatpush2.msra.mxu0 0.0
    %428 = vmatprep.subr.mxu0 0.0
    %429 = vmatpush2.msra.mxu0 0.0
    %430 = vmatprep.subr.mxu0 0.0
    %431 = vmatpush2.msra.mxu0 0.0
    %432 = vmatprep.subr.mxu0 0.0
    %433 = vmatpush2.msra.mxu0 0.0
    %434 = vmatprep.subr.mxu0 0.0
    %435 = vmatpush2.msra.mxu0 0.0
    %436 = vmatprep.subr.mxu0 0.0
    %437 = vmatpush2.msra.mxu0 0.0
    %438 = vmatprep.subr.mxu0 0.0
    %439 = vmatpush2.msra.mxu0 0.0
    %440 = vmatprep.subr.mxu0 0.0
    %441 = vmatpush2.msra.mxu0 0.0
    %442 = vmatprep.subr.mxu0 0.0
    %443 = vmatpush2.msra.mxu0 0.0
    %444 = vmatprep.subr.mxu0 0.0
    %445 = vmatpush2.msra.mxu0 0.0
    %446 = vmatprep.subr.mxu0 0.0
    %447 = vmatpush2.msra.mxu0 0.0
    %448 = vmatprep.subr.mxu0 0.0
    %449 = vmatpush2.msra.mxu0 0.0
    %450 = vmatprep.subr.mxu0 0.0
    %451 = vmatpush2.msra.mxu0 0.0
    %452 = vmatprep.subr.mxu0 0.0
    %453 = vmatpush2.msra.mxu0 0.0
    %454 = vmatprep.subr.mxu0 0.0
    %455 = vmatpush2.msra.mxu0 0.0
    %456 = vmatprep.subr.mxu0 0.0
    %457 = vmatpush2.msra.mxu0 0.0
    %458 = vmatprep.mubr.f32.mxu0 0.0
    %459 = vmatmul.mubr.f32.gmra.mxu0 %v392
    %v460 = vpop.f32.mrf.mxu0
    %v461 = vadd.f32 0.0, %v460
    %v462 = vpop.f32.mrf.mxu0
    %463 = vdwg.mxu0
    %v464 = vadd.f32 %v381, %v461
    %s465 = scalar_lea.vmem %s1, 40
    %v466 = vld [vmem:[%s465] sm:$0xff]
    %467 = vrot.lane.b32.xlu0 %v56, 118
    %v468 = vpop.permute.xlu0 %467
    %469 = vrot.lane.b32.xlu0 %v59, 118
    %v470 = vpop.permute.xlu0 %469
    %vm471 = vcmask 965632
    %v472 = vsel %vm471, %v468, %v470
    %v475 = vsel %vm69, %v466, 0
    %477 = vmatprep.subr.mxu0 0.0
    %478 = vmatpush1.msra.mxu0 0.0
    %479 = vmatprep.subr.mxu0 0.0
    %480 = vmatpush1.msra.mxu0 0.0
    %481 = vmatprep.subr.mxu0 0.0
    %482 = vmatpush1.msra.mxu0 0.0
    %483 = vmatprep.subr.mxu0 0.0
    %484 = vmatpush1.msra.mxu0 0.0
    %485 = vmatprep.subr.mxu0 0.0
    %486 = vmatpush1.msra.mxu0 0.0
    %487 = vmatprep.subr.mxu0 0.0
    %488 = vmatpush1.msra.mxu0 0.0
    %489 = vmatprep.subr.mxu0 0.0
    %490 = vmatpush1.msra.mxu0 0.0
    %491 = vmatprep.subr.mxu0 0.0
    %492 = vmatpush1.msra.mxu0 0.0
    %493 = vmatprep.subr.mxu0 0.0
    %494 = vmatpush1.msra.mxu0 0.0
    %495 = vmatprep.subr.mxu0 0.0
    %496 = vmatpush1.msra.mxu0 0.0
    %497 = vmatprep.subr.mxu0 0.0
    %498 = vmatpush1.msra.mxu0 0.0
    %499 = vmatprep.subr.mxu0 0.0
    %500 = vmatpush1.msra.mxu0 0.0
    %501 = vmatprep.subr.mxu0 0.0
    %502 = vmatpush1.msra.mxu0 0.0
    %503 = vmatprep.subr.mxu0 0.0
    %504 = vmatpush1.msra.mxu0 0.0
    %505 = vmatprep.subr.mxu0 0.0
    %506 = vmatpush1.msra.mxu0 0.0
    %507 = vmatprep.subr.mxu0 0.0
    %508 = vmatpush1.msra.mxu0 %v472
    %509 = vmatprep.subr.mxu0 0.0
    %510 = vmatpush2.msra.mxu0 0.0
    %511 = vmatprep.subr.mxu0 0.0
    %512 = vmatpush2.msra.mxu0 0.0
    %513 = vmatprep.subr.mxu0 0.0
    %514 = vmatpush2.msra.mxu0 0.0
    %515 = vmatprep.subr.mxu0 0.0
    %516 = vmatpush2.msra.mxu0 0.0
    %517 = vmatprep.subr.mxu0 0.0
    %518 = vmatpush2.msra.mxu0 0.0
    %519 = vmatprep.subr.mxu0 0.0
    %520 = vmatpush2.msra.mxu0 0.0
    %521 = vmatprep.subr.mxu0 0.0
    %522 = vmatpush2.msra.mxu0 0.0
    %523 = vmatprep.subr.mxu0 0.0
    %524 = vmatpush2.msra.mxu0 0.0
    %525 = vmatprep.subr.mxu0 0.0
    %526 = vmatpush2.msra.mxu0 0.0
    %527 = vmatprep.subr.mxu0 0.0
    %528 = vmatpush2.msra.mxu0 0.0
    %529 = vmatprep.subr.mxu0 0.0
    %530 = vmatpush2.msra.mxu0 0.0
    %531 = vmatprep.subr.mxu0 0.0
    %532 = vmatpush2.msra.mxu0 0.0
    %533 = vmatprep.subr.mxu0 0.0
    %534 = vmatpush2.msra.mxu0 0.0
    %535 = vmatprep.subr.mxu0 0.0
    %536 = vmatpush2.msra.mxu0 0.0
    %537 = vmatprep.subr.mxu0 0.0
    %538 = vmatpush2.msra.mxu0 0.0
    %539 = vmatprep.subr.mxu0 0.0
    %540 = vmatpush2.msra.mxu0 0.0
    %541 = vmatprep.mubr.f32.mxu0 0.0
    %542 = vmatmul.mubr.f32.gmra.mxu0 %v475
    %v543 = vpop.f32.mrf.mxu0
    %v544 = vadd.f32 0.0, %v543
    %v545 = vpop.f32.mrf.mxu0
    %546 = vdwg.mxu0
    %v547 = vadd.f32 %v464, %v544
    %s548 = scalar_lea.vmem %s1, 48
    %v549 = vld [vmem:[%s548] sm:$0xff]
    %550 = vrot.lane.b32.xlu0 %v56, 112
    %v551 = vpop.permute.xlu0 %550
    %552 = vrot.lane.b32.xlu0 %v59, 112
    %v553 = vpop.permute.xlu0 %552
    %vm554 = vcmask 916480
    %v555 = vsel %vm554, %v551, %v553
    %v558 = vsel %vm69, %v549, 0
    %560 = vmatprep.subr.mxu0 0.0
    %561 = vmatpush1.msra.mxu0 0.0
    %562 = vmatprep.subr.mxu0 0.0
    %563 = vmatpush1.msra.mxu0 0.0
    %564 = vmatprep.subr.mxu0 0.0
    %565 = vmatpush1.msra.mxu0 0.0
    %566 = vmatprep.subr.mxu0 0.0
    %567 = vmatpush1.msra.mxu0 0.0
    %568 = vmatprep.subr.mxu0 0.0
    %569 = vmatpush1.msra.mxu0 0.0
    %570 = vmatprep.subr.mxu0 0.0
    %571 = vmatpush1.msra.mxu0 0.0
    %572 = vmatprep.subr.mxu0 0.0
    %573 = vmatpush1.msra.mxu0 0.0
    %574 = vmatprep.subr.mxu0 0.0
    %575 = vmatpush1.msra.mxu0 0.0
    %576 = vmatprep.subr.mxu0 0.0
    %577 = vmatpush1.msra.mxu0 0.0
    %578 = vmatprep.subr.mxu0 0.0
    %579 = vmatpush1.msra.mxu0 0.0
    %580 = vmatprep.subr.mxu0 0.0
    %581 = vmatpush1.msra.mxu0 0.0
    %582 = vmatprep.subr.mxu0 0.0
    %583 = vmatpush1.msra.mxu0 0.0
    %584 = vmatprep.subr.mxu0 0.0
    %585 = vmatpush1.msra.mxu0 0.0
    %586 = vmatprep.subr.mxu0 0.0
    %587 = vmatpush1.msra.mxu0 0.0
    %588 = vmatprep.subr.mxu0 0.0
    %589 = vmatpush1.msra.mxu0 0.0
    %590 = vmatprep.subr.mxu0 0.0
    %591 = vmatpush1.msra.mxu0 %v555
    %592 = vmatprep.subr.mxu0 0.0
    %593 = vmatpush2.msra.mxu0 0.0
    %594 = vmatprep.subr.mxu0 0.0
    %595 = vmatpush2.msra.mxu0 0.0
    %596 = vmatprep.subr.mxu0 0.0
    %597 = vmatpush2.msra.mxu0 0.0
    %598 = vmatprep.subr.mxu0 0.0
    %599 = vmatpush2.msra.mxu0 0.0
    %600 = vmatprep.subr.mxu0 0.0
    %601 = vmatpush2.msra.mxu0 0.0
    %602 = vmatprep.subr.mxu0 0.0
    %603 = vmatpush2.msra.mxu0 0.0
    %604 = vmatprep.subr.mxu0 0.0
    %605 = vmatpush2.msra.mxu0 0.0
    %606 = vmatprep.subr.mxu0 0.0
    %607 = vmatpush2.msra.mxu0 0.0
    %608 = vmatprep.subr.mxu0 0.0
    %609 = vmatpush2.msra.mxu0 0.0
    %610 = vmatprep.subr.mxu0 0.0
    %611 = vmatpush2.msra.mxu0 0.0
    %612 = vmatprep.subr.mxu0 0.0
    %613 = vmatpush2.msra.mxu0 0.0
    %614 = vmatprep.subr.mxu0 0.0
    %615 = vmatpush2.msra.mxu0 0.0
    %616 = vmatprep.subr.mxu0 0.0
    %617 = vmatpush2.msra.mxu0 0.0
    %618 = vmatprep.subr.mxu0 0.0
    %619 = vmatpush2.msra.mxu0 0.0
    %620 = vmatprep.subr.mxu0 0.0
    %621 = vmatpush2.msra.mxu0 0.0
    %622 = vmatprep.subr.mxu0 0.0
    %623 = vmatpush2.msra.mxu0 0.0
    %624 = vmatprep.mubr.f32.mxu0 0.0
    %625 = vmatmul.mubr.f32.gmra.mxu0 %v558
    %v626 = vpop.f32.mrf.mxu0
    %v627 = vadd.f32 0.0, %v626
    %v628 = vpop.f32.mrf.mxu0
    %629 = vdwg.mxu0
    %v630 = vadd.f32 %v547, %v627
    %s631 = scalar_lea.vmem %s1, 56
    %v632 = vld [vmem:[%s631] sm:$0xff]
    %633 = vrot.lane.b32.xlu0 %v56, 111
    %v634 = vpop.permute.xlu0 %633
    %635 = vrot.lane.b32.xlu0 %v59, 111
    %v636 = vpop.permute.xlu0 %635
    %vm637 = vcmask 908288
    %v638 = vsel %vm637, %v634, %v636
    %v641 = vsel %vm69, %v632, 0
    %643 = vmatprep.subr.mxu0 0.0
    %644 = vmatpush1.msra.mxu0 0.0
    %645 = vmatprep.subr.mxu0 0.0
    %646 = vmatpush1.msra.mxu0 0.0
    %647 = vmatprep.subr.mxu0 0.0
    %648 = vmatpush1.msra.mxu0 0.0
    %649 = vmatprep.subr.mxu0 0.0
    %650 = vmatpush1.msra.mxu0 0.0
    %651 = vmatprep.subr.mxu0 0.0
    %652 = vmatpush1.msra.mxu0 0.0
    %653 = vmatprep.subr.mxu0 0.0
    %654 = vmatpush1.msra.mxu0 0.0
    %655 = vmatprep.subr.mxu0 0.0
    %656 = vmatpush1.msra.mxu0 0.0
    %657 = vmatprep.subr.mxu0 0.0
    %658 = vmatpush1.msra.mxu0 0.0
    %659 = vmatprep.subr.mxu0 0.0
    %660 = vmatpush1.msra.mxu0 0.0
    %661 = vmatprep.subr.mxu0 0.0
    %662 = vmatpush1.msra.mxu0 0.0
    %663 = vmatprep.subr.mxu0 0.0
    %664 = vmatpush1.msra.mxu0 0.0
    %665 = vmatprep.subr.mxu0 0.0
    %666 = vmatpush1.msra.mxu0 0.0
    %667 = vmatprep.subr.mxu0 0.0
    %668 = vmatpush1.msra.mxu0 0.0
    %669 = vmatprep.subr.mxu0 0.0
    %670 = vmatpush1.msra.mxu0 0.0
    %671 = vmatprep.subr.mxu0 0.0
    %672 = vmatpush1.msra.mxu0 0.0
    %673 = vmatprep.subr.mxu0 0.0
    %674 = vmatpush1.msra.mxu0 %v638
    %675 = vmatprep.subr.mxu0 0.0
    %676 = vmatpush2.msra.mxu0 0.0
    %677 = vmatprep.subr.mxu0 0.0
    %678 = vmatpush2.msra.mxu0 0.0
    %679 = vmatprep.subr.mxu0 0.0
    %680 = vmatpush2.msra.mxu0 0.0
    %681 = vmatprep.subr.mxu0 0.0
    %682 = vmatpush2.msra.mxu0 0.0
    %683 = vmatprep.subr.mxu0 0.0
    %684 = vmatpush2.msra.mxu0 0.0
    %685 = vmatprep.subr.mxu0 0.0
    %686 = vmatpush2.msra.mxu0 0.0
    %687 = vmatprep.subr.mxu0 0.0
    %688 = vmatpush2.msra.mxu0 0.0
    %689 = vmatprep.subr.mxu0 0.0
    %690 = vmatpush2.msra.mxu0 0.0
    %691 = vmatprep.subr.mxu0 0.0
    %692 = vmatpush2.msra.mxu0 0.0
    %693 = vmatprep.subr.mxu0 0.0
    %694 = vmatpush2.msra.mxu0 0.0
    %695 = vmatprep.subr.mxu0 0.0
    %696 = vmatpush2.msra.mxu0 0.0
    %697 = vmatprep.subr.mxu0 0.0
    %698 = vmatpush2.msra.mxu0 0.0
    %699 = vmatprep.subr.mxu0 0.0
    %700 = vmatpush2.msra.mxu0 0.0
    %701 = vmatprep.subr.mxu0 0.0
    %702 = vmatpush2.msra.mxu0 0.0
    %703 = vmatprep.subr.mxu0 0.0
    %704 = vmatpush2.msra.mxu0 0.0
    %705 = vmatprep.subr.mxu0 0.0
    %706 = vmatpush2.msra.mxu0 0.0
    %707 = vmatprep.mubr.f32.mxu0 0.0
    %708 = vmatmul.mubr.f32.gmra.mxu0 %v641
    %v709 = vpop.f32.mrf.mxu0
    %v710 = vadd.f32 0.0, %v709
    %v711 = vpop.f32.mrf.mxu0
    %712 = vdwg.mxu0
    %v713 = vadd.f32 %v630, %v710
    %s714 = scalar_lea.vmem %s1, 64
    %v715 = vld [vmem:[%s714] sm:$0xff]
    %716 = vrot.lane.b32.xlu0 %v56, 110
    %v717 = vpop.permute.xlu0 %716
    %718 = vrot.lane.b32.xlu0 %v59, 110
    %v719 = vpop.permute.xlu0 %718
    %vm720 = vcmask 900096
    %v721 = vsel %vm720, %v717, %v719
    %v724 = vsel %vm69, %v715, 0
    %726 = vmatprep.subr.mxu0 0.0
    %727 = vmatpush1.msra.mxu0 0.0
    %728 = vmatprep.subr.mxu0 0.0
    %729 = vmatpush1.msra.mxu0 0.0
    %730 = vmatprep.subr.mxu0 0.0
    %731 = vmatpush1.msra.mxu0 0.0
    %732 = vmatprep.subr.mxu0 0.0
    %733 = vmatpush1.msra.mxu0 0.0
    %734 = vmatprep.subr.mxu0 0.0
    %735 = vmatpush1.msra.mxu0 0.0
    %736 = vmatprep.subr.mxu0 0.0
    %737 = vmatpush1.msra.mxu0 0.0
    %738 = vmatprep.subr.mxu0 0.0
    %739 = vmatpush1.msra.mxu0 0.0
    %740 = vmatprep.subr.mxu0 0.0
    %741 = vmatpush1.msra.mxu0 0.0
    %742 = vmatprep.subr.mxu0 0.0
    %743 = vmatpush1.msra.mxu0 0.0
    %744 = vmatprep.subr.mxu0 0.0
    %745 = vmatpush1.msra.mxu0 0.0
    %746 = vmatprep.subr.mxu0 0.0
    %747 = vmatpush1.msra.mxu0 0.0
    %748 = vmatprep.subr.mxu0 0.0
    %749 = vmatpush1.msra.mxu0 0.0
    %750 = vmatprep.subr.mxu0 0.0
    %751 = vmatpush1.msra.mxu0 0.0
    %752 = vmatprep.subr.mxu0 0.0
    %753 = vmatpush1.msra.mxu0 0.0
    %754 = vmatprep.subr.mxu0 0.0
    %755 = vmatpush1.msra.mxu0 0.0
    %756 = vmatprep.subr.mxu0 0.0
    %757 = vmatpush1.msra.mxu0 %v721
    %758 = vmatprep.subr.mxu0 0.0
    %759 = vmatpush2.msra.mxu0 0.0
    %760 = vmatprep.subr.mxu0 0.0
    %761 = vmatpush2.msra.mxu0 0.0
    %762 = vmatprep.subr.mxu0 0.0
    %763 = vmatpush2.msra.mxu0 0.0
    %764 = vmatprep.subr.mxu0 0.0
    %765 = vmatpush2.msra.mxu0 0.0
    %766 = vmatprep.subr.mxu0 0.0
    %767 = vmatpush2.msra.mxu0 0.0
    %768 = vmatprep.subr.mxu0 0.0
    %769 = vmatpush2.msra.mxu0 0.0
    %770 = vmatprep.subr.mxu0 0.0
    %771 = vmatpush2.msra.mxu0 0.0
    %772 = vmatprep.subr.mxu0 0.0
    %773 = vmatpush2.msra.mxu0 0.0
    %774 = vmatprep.subr.mxu0 0.0
    %775 = vmatpush2.msra.mxu0 0.0
    %776 = vmatprep.subr.mxu0 0.0
    %777 = vmatpush2.msra.mxu0 0.0
    %778 = vmatprep.subr.mxu0 0.0
    %779 = vmatpush2.msra.mxu0 0.0
    %780 = vmatprep.subr.mxu0 0.0
    %781 = vmatpush2.msra.mxu0 0.0
    %782 = vmatprep.subr.mxu0 0.0
    %783 = vmatpush2.msra.mxu0 0.0
    %784 = vmatprep.subr.mxu0 0.0
    %785 = vmatpush2.msra.mxu0 0.0
    %786 = vmatprep.subr.mxu0 0.0
    %787 = vmatpush2.msra.mxu0 0.0
    %788 = vmatprep.subr.mxu0 0.0
    %789 = vmatpush2.msra.mxu0 0.0
    %790 = vmatprep.mubr.f32.mxu0 0.0
    %791 = vmatmul.mubr.f32.gmra.mxu0 %v724
    %v792 = vpop.f32.mrf.mxu0
    %v793 = vadd.f32 0.0, %v792
    %v794 = vpop.f32.mrf.mxu0
    %795 = vdwg.mxu0
    %v796 = vadd.f32 %v713, %v793
    %v797 = vld [vmem:[%s2] sm:$0xff]
    %799 = vset.pattern.permute.xlu0 0
    %800 = vperm.xlu0 %799, %v797
    %v801 = vpop.permute.xlu0 %800
    %v803 = vadd.f32 %v796, %v801
    %v804 = vmax.f32 %v803, 0.0
    %805 = vst [vmem:[#allocation3] sm:$0xff] %v804
    %v806 = vld [vmem:[%s3] sm:$0xff]
    %v807 = vld [vmem:[#allocation3] sm:$0xff]
    %s808 = scalar_lea.vmem %s3, 8
    %v809 = vld [vmem:[%s808] sm:$0xff]
    %v810 = vld [vmem:[#allocation3 + $0x8] sm:$0xff]
    %813 = vrot.lane.b32.xlu0 %v807, 127
    %v814 = vpop.permute.xlu0 %813
    %815 = vrot.lane.b32.xlu0 %v810, 127
    %v816 = vpop.permute.xlu0 %815
    %v817 = vsel %vm66, %v814, %v816
    %v820 = vsel %vm69, %v809, 0
    %822 = vmatprep.subr.mxu0 0.0
    %823 = vmatpush1.msra.mxu0 0.0
    %824 = vmatprep.subr.mxu0 0.0
    %825 = vmatpush1.msra.mxu0 0.0
    %826 = vmatprep.subr.mxu0 0.0
    %827 = vmatpush1.msra.mxu0 0.0
    %828 = vmatprep.subr.mxu0 0.0
    %829 = vmatpush1.msra.mxu0 0.0
    %830 = vmatprep.subr.mxu0 0.0
    %831 = vmatpush1.msra.mxu0 0.0
    %832 = vmatprep.subr.mxu0 0.0
    %833 = vmatpush1.msra.mxu0 0.0
    %834 = vmatprep.subr.mxu0 0.0
    %835 = vmatpush1.msra.mxu0 0.0
    %836 = vmatprep.subr.mxu0 0.0
    %837 = vmatpush1.msra.mxu0 0.0
    %838 = vmatprep.subr.mxu0 0.0
    %839 = vmatpush1.msra.mxu0 0.0
    %840 = vmatprep.subr.mxu0 0.0
    %841 = vmatpush1.msra.mxu0 0.0
    %842 = vmatprep.subr.mxu0 0.0
    %843 = vmatpush1.msra.mxu0 0.0
    %844 = vmatprep.subr.mxu0 0.0
    %845 = vmatpush1.msra.mxu0 0.0
    %846 = vmatprep.subr.mxu0 0.0
    %847 = vmatpush1.msra.mxu0 0.0
    %848 = vmatprep.subr.mxu0 0.0
    %849 = vmatpush1.msra.mxu0 0.0
    %850 = vmatprep.subr.mxu0 0.0
    %851 = vmatpush1.msra.mxu0 0.0
    %852 = vmatprep.subr.mxu0 0.0
    %853 = vmatpush1.msra.mxu0 %v817
    %854 = vmatprep.subr.mxu0 0.0
    %855 = vmatpush2.msra.mxu0 0.0
    %856 = vmatprep.subr.mxu0 0.0
    %857 = vmatpush2.msra.mxu0 0.0
    %858 = vmatprep.subr.mxu0 0.0
    %859 = vmatpush2.msra.mxu0 0.0
    %860 = vmatprep.subr.mxu0 0.0
    %861 = vmatpush2.msra.mxu0 0.0
    %862 = vmatprep.subr.mxu0 0.0
    %863 = vmatpush2.msra.mxu0 0.0
    %864 = vmatprep.subr.mxu0 0.0
    %865 = vmatpush2.msra.mxu0 0.0
    %866 = vmatprep.subr.mxu0 0.0
    %867 = vmatpush2.msra.mxu0 0.0
    %868 = vmatprep.subr.mxu0 0.0
    %869 = vmatpush2.msra.mxu0 0.0
    %870 = vmatprep.subr.mxu0 0.0
    %871 = vmatpush2.msra.mxu0 0.0
    %872 = vmatprep.subr.mxu0 0.0
    %873 = vmatpush2.msra.mxu0 0.0
    %874 = vmatprep.subr.mxu0 0.0
    %875 = vmatpush2.msra.mxu0 0.0
    %876 = vmatprep.subr.mxu0 0.0
    %877 = vmatpush2.msra.mxu0 0.0
    %878 = vmatprep.subr.mxu0 0.0
    %879 = vmatpush2.msra.mxu0 0.0
    %880 = vmatprep.subr.mxu0 0.0
    %881 = vmatpush2.msra.mxu0 0.0
    %882 = vmatprep.subr.mxu0 0.0
    %883 = vmatpush2.msra.mxu0 0.0
    %884 = vmatprep.subr.mxu0 0.0
    %885 = vmatpush2.msra.mxu0 0.0
    %886 = vmatprep.mubr.f32.mxu0 0.0
    %887 = vmatmul.mubr.f32.gmra.mxu0 %v820
    %v888 = vpop.f32.mrf.mxu0
    %v889 = vadd.f32 0.0, %v888
    %v890 = vpop.f32.mrf.mxu0
    %891 = vdwg.mxu0
    %v893 = vsel %vm69, %v806, 0
    %895 = vmatprep.subr.mxu0 0.0
    %896 = vmatpush1.msra.mxu0 0.0
    %897 = vmatprep.subr.mxu0 0.0
    %898 = vmatpush1.msra.mxu0 0.0
    %899 = vmatprep.subr.mxu0 0.0
    %900 = vmatpush1.msra.mxu0 0.0
    %901 = vmatprep.subr.mxu0 0.0
    %902 = vmatpush1.msra.mxu0 0.0
    %903 = vmatprep.subr.mxu0 0.0
    %904 = vmatpush1.msra.mxu0 0.0
    %905 = vmatprep.subr.mxu0 0.0
    %906 = vmatpush1.msra.mxu0 0.0
    %907 = vmatprep.subr.mxu0 0.0
    %908 = vmatpush1.msra.mxu0 0.0
    %909 = vmatprep.subr.mxu0 0.0
    %910 = vmatpush1.msra.mxu0 0.0
    %911 = vmatprep.subr.mxu0 0.0
    %912 = vmatpush1.msra.mxu0 0.0
    %913 = vmatprep.subr.mxu0 0.0
    %914 = vmatpush1.msra.mxu0 0.0
    %915 = vmatprep.subr.mxu0 0.0
    %916 = vmatpush1.msra.mxu0 0.0
    %917 = vmatprep.subr.mxu0 0.0
    %918 = vmatpush1.msra.mxu0 0.0
    %919 = vmatprep.subr.mxu0 0.0
    %920 = vmatpush1.msra.mxu0 0.0
    %921 = vmatprep.subr.mxu0 0.0
    %922 = vmatpush1.msra.mxu0 0.0
    %923 = vmatprep.subr.mxu0 0.0
    %924 = vmatpush1.msra.mxu0 0.0
    %925 = vmatprep.subr.mxu0 0.0
    %926 = vmatpush1.msra.mxu0 %v807
    %927 = vmatprep.subr.mxu0 0.0
    %928 = vmatpush2.msra.mxu0 0.0
    %929 = vmatprep.subr.mxu0 0.0
    %930 = vmatpush2.msra.mxu0 0.0
    %931 = vmatprep.subr.mxu0 0.0
    %932 = vmatpush2.msra.mxu0 0.0
    %933 = vmatprep.subr.mxu0 0.0
    %934 = vmatpush2.msra.mxu0 0.0
    %935 = vmatprep.subr.mxu0 0.0
    %936 = vmatpush2.msra.mxu0 0.0
    %937 = vmatprep.subr.mxu0 0.0
    %938 = vmatpush2.msra.mxu0 0.0
    %939 = vmatprep.subr.mxu0 0.0
    %940 = vmatpush2.msra.mxu0 0.0
    %941 = vmatprep.subr.mxu0 0.0
    %942 = vmatpush2.msra.mxu0 0.0
    %943 = vmatprep.subr.mxu0 0.0
    %944 = vmatpush2.msra.mxu0 0.0
    %945 = vmatprep.subr.mxu0 0.0
    %946 = vmatpush2.msra.mxu0 0.0
    %947 = vmatprep.subr.mxu0 0.0
    %948 = vmatpush2.msra.mxu0 0.0
    %949 = vmatprep.subr.mxu0 0.0
    %950 = vmatpush2.msra.mxu0 0.0
    %951 = vmatprep.subr.mxu0 0.0
    %952 = vmatpush2.msra.mxu0 0.0
    %953 = vmatprep.subr.mxu0 0.0
    %954 = vmatpush2.msra.mxu0 0.0
    %955 = vmatprep.subr.mxu0 0.0
    %956 = vmatpush2.msra.mxu0 0.0
    %957 = vmatprep.subr.mxu0 0.0
    %958 = vmatpush2.msra.mxu0 0.0
    %959 = vmatprep.mubr.f32.mxu0 0.0
    %960 = vmatmul.mubr.f32.gmra.mxu0 %v893
    %v961 = vpop.f32.mrf.mxu0
    %v962 = vadd.f32 %v889, %v961
    %v963 = vpop.f32.mrf.mxu0
    %964 = vdwg.mxu0
    %s965 = scalar_lea.vmem %s3, 16
    %v966 = vld [vmem:[%s965] sm:$0xff]
    %967 = vrot.lane.b32.xlu0 %v807, 126
    %v968 = vpop.permute.xlu0 %967
    %969 = vrot.lane.b32.xlu0 %v810, 126
    %v970 = vpop.permute.xlu0 %969
    %v971 = vsel %vm222, %v968, %v970
    %v974 = vsel %vm69, %v966, 0
    %976 = vmatprep.subr.mxu0 0.0
    %977 = vmatpush1.msra.mxu0 0.0
    %978 = vmatprep.subr.mxu0 0.0
    %979 = vmatpush1.msra.mxu0 0.0
    %980 = vmatprep.subr.mxu0 0.0
    %981 = vmatpush1.msra.mxu0 0.0
    %982 = vmatprep.subr.mxu0 0.0
    %983 = vmatpush1.msra.mxu0 0.0
    %984 = vmatprep.subr.mxu0 0.0
    %985 = vmatpush1.msra.mxu0 0.0
    %986 = vmatprep.subr.mxu0 0.0
    %987 = vmatpush1.msra.mxu0 0.0
    %988 = vmatprep.subr.mxu0 0.0
    %989 = vmatpush1.msra.mxu0 0.0
    %990 = vmatprep.subr.mxu0 0.0
    %991 = vmatpush1.msra.mxu0 0.0
    %992 = vmatprep.subr.mxu0 0.0
    %993 = vmatpush1.msra.mxu0 0.0
    %994 = vmatprep.subr.mxu0 0.0
    %995 = vmatpush1.msra.mxu0 0.0
    %996 = vmatprep.subr.mxu0 0.0
    %997 = vmatpush1.msra.mxu0 0.0
    %998 = vmatprep.subr.mxu0 0.0
    %999 = vmatpush1.msra.mxu0 0.0
    %1000 = vmatprep.subr.mxu0 0.0
    %1001 = vmatpush1.msra.mxu0 0.0
    %1002 = vmatprep.subr.mxu0 0.0
    %1003 = vmatpush1.msra.mxu0 0.0
    %1004 = vmatprep.subr.mxu0 0.0
    %1005 = vmatpush1.msra.mxu0 0.0
    %1006 = vmatprep.subr.mxu0 0.0
    %1007 = vmatpush1.msra.mxu0 %v971
    %1008 = vmatprep.subr.mxu0 0.0
    %1009 = vmatpush2.msra.mxu0 0.0
    %1010 = vmatprep.subr.mxu0 0.0
    %1011 = vmatpush2.msra.mxu0 0.0
    %1012 = vmatprep.subr.mxu0 0.0
    %1013 = vmatpush2.msra.mxu0 0.0
    %1014 = vmatprep.subr.mxu0 0.0
    %1015 = vmatpush2.msra.mxu0 0.0
    %1016 = vmatprep.subr.mxu0 0.0
    %1017 = vmatpush2.msra.mxu0 0.0
    %1018 = vmatprep.subr.mxu0 0.0
    %1019 = vmatpush2.msra.mxu0 0.0
    %1020 = vmatprep.subr.mxu0 0.0
    %1021 = vmatpush2.msra.mxu0 0.0
    %1022 = vmatprep.subr.mxu0 0.0
    %1023 = vmatpush2.msra.mxu0 0.0
    %1024 = vmatprep.subr.mxu0 0.0
    %1025 = vmatpush2.msra.mxu0 0.0
    %1026 = vmatprep.subr.mxu0 0.0
    %1027 = vmatpush2.msra.mxu0 0.0
    %1028 = vmatprep.subr.mxu0 0.0
    %1029 = vmatpush2.msra.mxu0 0.0
    %1030 = vmatprep.subr.mxu0 0.0
    %1031 = vmatpush2.msra.mxu0 0.0
    %1032 = vmatprep.subr.mxu0 0.0
    %1033 = vmatpush2.msra.mxu0 0.0
    %1034 = vmatprep.subr.mxu0 0.0
    %1035 = vmatpush2.msra.mxu0 0.0
    %1036 = vmatprep.subr.mxu0 0.0
    %1037 = vmatpush2.msra.mxu0 0.0
    %1038 = vmatprep.subr.mxu0 0.0
    %1039 = vmatpush2.msra.mxu0 0.0
    %1040 = vmatprep.mubr.f32.mxu0 0.0
    %1041 = vmatmul.mubr.f32.gmra.mxu0 %v974
    %v1042 = vpop.f32.mrf.mxu0
    %v1043 = vadd.f32 0.0, %v1042
    %v1044 = vpop.f32.mrf.mxu0
    %1045 = vdwg.mxu0
    %v1046 = vadd.f32 %v962, %v1043
    %s1047 = scalar_lea.vmem %s3, 24
    %v1048 = vld [vmem:[%s1047] sm:$0xff]
    %1049 = vrot.lane.b32.xlu0 %v807, 120
    %v1050 = vpop.permute.xlu0 %1049
    %1051 = vrot.lane.b32.xlu0 %v810, 120
    %v1052 = vpop.permute.xlu0 %1051
    %v1053 = vsel %vm305, %v1050, %v1052
    %v1056 = vsel %vm69, %v1048, 0
    %1058 = vmatprep.subr.mxu0 0.0
    %1059 = vmatpush1.msra.mxu0 0.0
    %1060 = vmatprep.subr.mxu0 0.0
    %1061 = vmatpush1.msra.mxu0 0.0
    %1062 = vmatprep.subr.mxu0 0.0
    %1063 = vmatpush1.msra.mxu0 0.0
    %1064 = vmatprep.subr.mxu0 0.0
    %1065 = vmatpush1.msra.mxu0 0.0
    %1066 = vmatprep.subr.mxu0 0.0
    %1067 = vmatpush1.msra.mxu0 0.0
    %1068 = vmatprep.subr.mxu0 0.0
    %1069 = vmatpush1.msra.mxu0 0.0
    %1070 = vmatprep.subr.mxu0 0.0
    %1071 = vmatpush1.msra.mxu0 0.0
    %1072 = vmatprep.subr.mxu0 0.0
    %1073 = vmatpush1.msra.mxu0 0.0
    %1074 = vmatprep.subr.mxu0 0.0
    %1075 = vmatpush1.msra.mxu0 0.0
    %1076 = vmatprep.subr.mxu0 0.0
    %1077 = vmatpush1.msra.mxu0 0.0
    %1078 = vmatprep.subr.mxu0 0.0
    %1079 = vmatpush1.msra.mxu0 0.0
    %1080 = vmatprep.subr.mxu0 0.0
    %1081 = vmatpush1.msra.mxu0 0.0
    %1082 = vmatprep.subr.mxu0 0.0
    %1083 = vmatpush1.msra.mxu0 0.0
    %1084 = vmatprep.subr.mxu0 0.0
    %1085 = vmatpush1.msra.mxu0 0.0
    %1086 = vmatprep.subr.mxu0 0.0
    %1087 = vmatpush1.msra.mxu0 0.0
    %1088 = vmatprep.subr.mxu0 0.0
    %1089 = vmatpush1.msra.mxu0 %v1053
    %1090 = vmatprep.subr.mxu0 0.0
    %1091 = vmatpush2.msra.mxu0 0.0
    %1092 = vmatprep.subr.mxu0 0.0
    %1093 = vmatpush2.msra.mxu0 0.0
    %1094 = vmatprep.subr.mxu0 0.0
    %1095 = vmatpush2.msra.mxu0 0.0
    %1096 = vmatprep.subr.mxu0 0.0
    %1097 = vmatpush2.msra.mxu0 0.0
    %1098 = vmatprep.subr.mxu0 0.0
    %1099 = vmatpush2.msra.mxu0 0.0
    %1100 = vmatprep.subr.mxu0 0.0
    %1101 = vmatpush2.msra.mxu0 0.0
    %1102 = vmatprep.subr.mxu0 0.0
    %1103 = vmatpush2.msra.mxu0 0.0
    %1104 = vmatprep.subr.mxu0 0.0
    %1105 = vmatpush2.msra.mxu0 0.0
    %1106 = vmatprep.subr.mxu0 0.0
    %1107 = vmatpush2.msra.mxu0 0.0
    %1108 = vmatprep.subr.mxu0 0.0
    %1109 = vmatpush2.msra.mxu0 0.0
    %1110 = vmatprep.subr.mxu0 0.0
    %1111 = vmatpush2.msra.mxu0 0.0
    %1112 = vmatprep.subr.mxu0 0.0
    %1113 = vmatpush2.msra.mxu0 0.0
    %1114 = vmatprep.subr.mxu0 0.0
    %1115 = vmatpush2.msra.mxu0 0.0
    %1116 = vmatprep.subr.mxu0 0.0
    %1117 = vmatpush2.msra.mxu0 0.0
    %1118 = vmatprep.subr.mxu0 0.0
    %1119 = vmatpush2.msra.mxu0 0.0
    %1120 = vmatprep.subr.mxu0 0.0
    %1121 = vmatpush2.msra.mxu0 0.0
    %1122 = vmatprep.mubr.f32.mxu0 0.0
    %1123 = vmatmul.mubr.f32.gmra.mxu0 %v1056
    %v1124 = vpop.f32.mrf.mxu0
    %v1125 = vadd.f32 0.0, %v1124
    %v1126 = vpop.f32.mrf.mxu0
    %1127 = vdwg.mxu0
    %v1128 = vadd.f32 %v1046, %v1125
    %s1129 = scalar_lea.vmem %s3, 32
    %v1130 = vld [vmem:[%s1129] sm:$0xff]
    %1131 = vrot.lane.b32.xlu0 %v807, 119
    %v1132 = vpop.permute.xlu0 %1131
    %1133 = vrot.lane.b32.xlu0 %v810, 119
    %v1134 = vpop.permute.xlu0 %1133
    %v1135 = vsel %vm388, %v1132, %v1134
    %v1138 = vsel %vm69, %v1130, 0
    %1140 = vmatprep.subr.mxu0 0.0
    %1141 = vmatpush1.msra.mxu0 0.0
    %1142 = vmatprep.subr.mxu0 0.0
    %1143 = vmatpush1.msra.mxu0 0.0
    %1144 = vmatprep.subr.mxu0 0.0
    %1145 = vmatpush1.msra.mxu0 0.0
    %1146 = vmatprep.subr.mxu0 0.0
    %1147 = vmatpush1.msra.mxu0 0.0
    %1148 = vmatprep.subr.mxu0 0.0
    %1149 = vmatpush1.msra.mxu0 0.0
    %1150 = vmatprep.subr.mxu0 0.0
    %1151 = vmatpush1.msra.mxu0 0.0
    %1152 = vmatprep.subr.mxu0 0.0
    %1153 = vmatpush1.msra.mxu0 0.0
    %1154 = vmatprep.subr.mxu0 0.0
    %1155 = vmatpush1.msra.mxu0 0.0
    %1156 = vmatprep.subr.mxu0 0.0
    %1157 = vmatpush1.msra.mxu0 0.0
    %1158 = vmatprep.subr.mxu0 0.0
    %1159 = vmatpush1.msra.mxu0 0.0
    %1160 = vmatprep.subr.mxu0 0.0
    %1161 = vmatpush1.msra.mxu0 0.0
    %1162 = vmatprep.subr.mxu0 0.0
    %1163 = vmatpush1.msra.mxu0 0.0
    %1164 = vmatprep.subr.mxu0 0.0
    %1165 = vmatpush1.msra.mxu0 0.0
    %1166 = vmatprep.subr.mxu0 0.0
    %1167 = vmatpush1.msra.mxu0 0.0
    %1168 = vmatprep.subr.mxu0 0.0
    %1169 = vmatpush1.msra.mxu0 0.0
    %1170 = vmatprep.subr.mxu0 0.0
    %1171 = vmatpush1.msra.mxu0 %v1135
    %1172 = vmatprep.subr.mxu0 0.0
    %1173 = vmatpush2.msra.mxu0 0.0
    %1174 = vmatprep.subr.mxu0 0.0
    %1175 = vmatpush2.msra.mxu0 0.0
    %1176 = vmatprep.subr.mxu0 0.0
    %1177 = vmatpush2.msra.mxu0 0.0
    %1178 = vmatprep.subr.mxu0 0.0
    %1179 = vmatpush2.msra.mxu0 0.0
    %1180 = vmatprep.subr.mxu0 0.0
    %1181 = vmatpush2.msra.mxu0 0.0
    %1182 = vmatprep.subr.mxu0 0.0
    %1183 = vmatpush2.msra.mxu0 0.0
    %1184 = vmatprep.subr.mxu0 0.0
    %1185 = vmatpush2.msra.mxu0 0.0
    %1186 = vmatprep.subr.mxu0 0.0
    %1187 = vmatpush2.msra.mxu0 0.0
    %1188 = vmatprep.subr.mxu0 0.0
    %1189 = vmatpush2.msra.mxu0 0.0
    %1190 = vmatprep.subr.mxu0 0.0
    %1191 = vmatpush2.msra.mxu0 0.0
    %1192 = vmatprep.subr.mxu0 0.0
    %1193 = vmatpush2.msra.mxu0 0.0
    %1194 = vmatprep.subr.mxu0 0.0
    %1195 = vmatpush2.msra.mxu0 0.0
    %1196 = vmatprep.subr.mxu0 0.0
    %1197 = vmatpush2.msra.mxu0 0.0
    %1198 = vmatprep.subr.mxu0 0.0
    %1199 = vmatpush2.msra.mxu0 0.0
    %1200 = vmatprep.subr.mxu0 0.0
    %1201 = vmatpush2.msra.mxu0 0.0
    %1202 = vmatprep.subr.mxu0 0.0
    %1203 = vmatpush2.msra.mxu0 0.0
    %1204 = vmatprep.mubr.f32.mxu0 0.0
    %1205 = vmatmul.mubr.f32.gmra.mxu0 %v1138
    %v1206 = vpop.f32.mrf.mxu0
    %v1207 = vadd.f32 0.0, %v1206
    %v1208 = vpop.f32.mrf.mxu0
    %1209 = vdwg.mxu0
    %v1210 = vadd.f32 %v1128, %v1207
    %s1211 = scalar_lea.vmem %s3, 40
    %v1212 = vld [vmem:[%s1211] sm:$0xff]
    %1213 = vrot.lane.b32.xlu0 %v807, 118
    %v1214 = vpop.permute.xlu0 %1213
    %1215 = vrot.lane.b32.xlu0 %v810, 118
    %v1216 = vpop.permute.xlu0 %1215
    %v1217 = vsel %vm471, %v1214, %v1216
    %v1220 = vsel %vm69, %v1212, 0
    %1222 = vmatprep.subr.mxu0 0.0
    %1223 = vmatpush1.msra.mxu0 0.0
    %1224 = vmatprep.subr.mxu0 0.0
    %1225 = vmatpush1.msra.mxu0 0.0
    %1226 = vmatprep.subr.mxu0 0.0
    %1227 = vmatpush1.msra.mxu0 0.0
    %1228 = vmatprep.subr.mxu0 0.0
    %1229 = vmatpush1.msra.mxu0 0.0
    %1230 = vmatprep.subr.mxu0 0.0
    %1231 = vmatpush1.msra.mxu0 0.0
    %1232 = vmatprep.subr.mxu0 0.0
    %1233 = vmatpush1.msra.mxu0 0.0
    %1234 = vmatprep.subr.mxu0 0.0
    %1235 = vmatpush1.msra.mxu0 0.0
    %1236 = vmatprep.subr.mxu0 0.0
    %1237 = vmatpush1.msra.mxu0 0.0
    %1238 = vmatprep.subr.mxu0 0.0
    %1239 = vmatpush1.msra.mxu0 0.0
    %1240 = vmatprep.subr.mxu0 0.0
    %1241 = vmatpush1.msra.mxu0 0.0
    %1242 = vmatprep.subr.mxu0 0.0
    %1243 = vmatpush1.msra.mxu0 0.0
    %1244 = vmatprep.subr.mxu0 0.0
    %1245 = vmatpush1.msra.mxu0 0.0
    %1246 = vmatprep.subr.mxu0 0.0
    %1247 = vmatpush1.msra.mxu0 0.0
    %1248 = vmatprep.subr.mxu0 0.0
    %1249 = vmatpush1.msra.mxu0 0.0
    %1250 = vmatprep.subr.mxu0 0.0
    %1251 = vmatpush1.msra.mxu0 0.0
    %1252 = vmatprep.subr.mxu0 0.0
    %1253 = vmatpush1.msra.mxu0 %v1217
    %1254 = vmatprep.subr.mxu0 0.0
    %1255 = vmatpush2.msra.mxu0 0.0
    %1256 = vmatprep.subr.mxu0 0.0
    %1257 = vmatpush2.msra.mxu0 0.0
    %1258 = vmatprep.subr.mxu0 0.0
    %1259 = vmatpush2.msra.mxu0 0.0
    %1260 = vmatprep.subr.mxu0 0.0
    %1261 = vmatpush2.msra.mxu0 0.0
    %1262 = vmatprep.subr.mxu0 0.0
    %1263 = vmatpush2.msra.mxu0 0.0
    %1264 = vmatprep.subr.mxu0 0.0
    %1265 = vmatpush2.msra.mxu0 0.0
    %1266 = vmatprep.subr.mxu0 0.0
    %1267 = vmatpush2.msra.mxu0 0.0
    %1268 = vmatprep.subr.mxu0 0.0
    %1269 = vmatpush2.msra.mxu0 0.0
    %1270 = vmatprep.subr.mxu0 0.0
    %1271 = vmatpush2.msra.mxu0 0.0
    %1272 = vmatprep.subr.mxu0 0.0
    %1273 = vmatpush2.msra.mxu0 0.0
    %1274 = vmatprep.subr.mxu0 0.0
    %1275 = vmatpush2.msra.mxu0 0.0
    %1276 = vmatprep.subr.mxu0 0.0
    %1277 = vmatpush2.msra.mxu0 0.0
    %1278 = vmatprep.subr.mxu0 0.0
    %1279 = vmatpush2.msra.mxu0 0.0
    %1280 = vmatprep.subr.mxu0 0.0
    %1281 = vmatpush2.msra.mxu0 0.0
    %1282 = vmatprep.subr.mxu0 0.0
    %1283 = vmatpush2.msra.mxu0 0.0
    %1284 = vmatprep.subr.mxu0 0.0
    %1285 = vmatpush2.msra.mxu0 0.0
    %1286 = vmatprep.mubr.f32.mxu0 0.0
    %1287 = vmatmul.mubr.f32.gmra.mxu0 %v1220
    %v1288 = vpop.f32.mrf.mxu0
    %v1289 = vadd.f32 0.0, %v1288
    %v1290 = vpop.f32.mrf.mxu0
    %1291 = vdwg.mxu0
    %v1292 = vadd.f32 %v1210, %v1289
    %s1293 = scalar_lea.vmem %s3, 48
    %v1294 = vld [vmem:[%s1293] sm:$0xff]
    %1295 = vrot.lane.b32.xlu0 %v807, 112
    %v1296 = vpop.permute.xlu0 %1295
    %1297 = vrot.lane.b32.xlu0 %v810, 112
    %v1298 = vpop.permute.xlu0 %1297
    %v1299 = vsel %vm554, %v1296, %v1298
    %v1302 = vsel %vm69, %v1294, 0
    %1304 = vmatprep.subr.mxu0 0.0
    %1305 = vmatpush1.msra.mxu0 0.0
    %1306 = vmatprep.subr.mxu0 0.0
    %1307 = vmatpush1.msra.mxu0 0.0
    %1308 = vmatprep.subr.mxu0 0.0
    %1309 = vmatpush1.msra.mxu0 0.0
    %1310 = vmatprep.subr.mxu0 0.0
    %1311 = vmatpush1.msra.mxu0 0.0
    %1312 = vmatprep.subr.mxu0 0.0
    %1313 = vmatpush1.msra.mxu0 0.0
    %1314 = vmatprep.subr.mxu0 0.0
    %1315 = vmatpush1.msra.mxu0 0.0
    %1316 = vmatprep.subr.mxu0 0.0
    %1317 = vmatpush1.msra.mxu0 0.0
    %1318 = vmatprep.subr.mxu0 0.0
    %1319 = vmatpush1.msra.mxu0 0.0
    %1320 = vmatprep.subr.mxu0 0.0
    %1321 = vmatpush1.msra.mxu0 0.0
    %1322 = vmatprep.subr.mxu0 0.0
    %1323 = vmatpush1.msra.mxu0 0.0
    %1324 = vmatprep.subr.mxu0 0.0
    %1325 = vmatpush1.msra.mxu0 0.0
    %1326 = vmatprep.subr.mxu0 0.0
    %1327 = vmatpush1.msra.mxu0 0.0
    %1328 = vmatprep.subr.mxu0 0.0
    %1329 = vmatpush1.msra.mxu0 0.0
    %1330 = vmatprep.subr.mxu0 0.0
    %1331 = vmatpush1.msra.mxu0 0.0
    %1332 = vmatprep.subr.mxu0 0.0
    %1333 = vmatpush1.msra.mxu0 0.0
    %1334 = vmatprep.subr.mxu0 0.0
    %1335 = vmatpush1.msra.mxu0 %v1299
    %1336 = vmatprep.subr.mxu0 0.0
    %1337 = vmatpush2.msra.mxu0 0.0
    %1338 = vmatprep.subr.mxu0 0.0
    %1339 = vmatpush2.msra.mxu0 0.0
    %1340 = vmatprep.subr.mxu0 0.0
    %1341 = vmatpush2.msra.mxu0 0.0
    %1342 = vmatprep.subr.mxu0 0.0
    %1343 = vmatpush2.msra.mxu0 0.0
    %1344 = vmatprep.subr.mxu0 0.0
    %1345 = vmatpush2.msra.mxu0 0.0
    %1346 = vmatprep.subr.mxu0 0.0
    %1347 = vmatpush2.msra.mxu0 0.0
    %1348 = vmatprep.subr.mxu0 0.0
    %1349 = vmatpush2.msra.mxu0 0.0
    %1350 = vmatprep.subr.mxu0 0.0
    %1351 = vmatpush2.msra.mxu0 0.0
    %1352 = vmatprep.subr.mxu0 0.0
    %1353 = vmatpush2.msra.mxu0 0.0
    %1354 = vmatprep.subr.mxu0 0.0
    %1355 = vmatpush2.msra.mxu0 0.0
    %1356 = vmatprep.subr.mxu0 0.0
    %1357 = vmatpush2.msra.mxu0 0.0
    %1358 = vmatprep.subr.mxu0 0.0
    %1359 = vmatpush2.msra.mxu0 0.0
    %1360 = vmatprep.subr.mxu0 0.0
    %1361 = vmatpush2.msra.mxu0 0.0
    %1362 = vmatprep.subr.mxu0 0.0
    %1363 = vmatpush2.msra.mxu0 0.0
    %1364 = vmatprep.subr.mxu0 0.0
    %1365 = vmatpush2.msra.mxu0 0.0
    %1366 = vmatprep.subr.mxu0 0.0
    %1367 = vmatpush2.msra.mxu0 0.0
    %1368 = vmatprep.mubr.f32.mxu0 0.0
    %1369 = vmatmul.mubr.f32.gmra.mxu0 %v1302
    %v1370 = vpop.f32.mrf.mxu0
    %v1371 = vadd.f32 0.0, %v1370
    %v1372 = vpop.f32.mrf.mxu0
    %1373 = vdwg.mxu0
    %v1374 = vadd.f32 %v1292, %v1371
    %s1375 = scalar_lea.vmem %s3, 56
    %v1376 = vld [vmem:[%s1375] sm:$0xff]
    %1377 = vrot.lane.b32.xlu0 %v807, 111
    %v1378 = vpop.permute.xlu0 %1377
    %1379 = vrot.lane.b32.xlu0 %v810, 111
    %v1380 = vpop.permute.xlu0 %1379
    %v1381 = vsel %vm637, %v1378, %v1380
    %v1384 = vsel %vm69, %v1376, 0
    %1386 = vmatprep.subr.mxu0 0.0
    %1387 = vmatpush1.msra.mxu0 0.0
    %1388 = vmatprep.subr.mxu0 0.0
    %1389 = vmatpush1.msra.mxu0 0.0
    %1390 = vmatprep.subr.mxu0 0.0
    %1391 = vmatpush1.msra.mxu0 0.0
    %1392 = vmatprep.subr.mxu0 0.0
    %1393 = vmatpush1.msra.mxu0 0.0
    %1394 = vmatprep.subr.mxu0 0.0
    %1395 = vmatpush1.msra.mxu0 0.0
    %1396 = vmatprep.subr.mxu0 0.0
    %1397 = vmatpush1.msra.mxu0 0.0
    %1398 = vmatprep.subr.mxu0 0.0
    %1399 = vmatpush1.msra.mxu0 0.0
    %1400 = vmatprep.subr.mxu0 0.0
    %1401 = vmatpush1.msra.mxu0 0.0
    %1402 = vmatprep.subr.mxu0 0.0
    %1403 = vmatpush1.msra.mxu0 0.0
    %1404 = vmatprep.subr.mxu0 0.0
    %1405 = vmatpush1.msra.mxu0 0.0
    %1406 = vmatprep.subr.mxu0 0.0
    %1407 = vmatpush1.msra.mxu0 0.0
    %1408 = vmatprep.subr.mxu0 0.0
    %1409 = vmatpush1.msra.mxu0 0.0
    %1410 = vmatprep.subr.mxu0 0.0
    %1411 = vmatpush1.msra.mxu0 0.0
    %1412 = vmatprep.subr.mxu0 0.0
    %1413 = vmatpush1.msra.mxu0 0.0
    %1414 = vmatprep.subr.mxu0 0.0
    %1415 = vmatpush1.msra.mxu0 0.0
    %1416 = vmatprep.subr.mxu0 0.0
    %1417 = vmatpush1.msra.mxu0 %v1381
    %1418 = vmatprep.subr.mxu0 0.0
    %1419 = vmatpush2.msra.mxu0 0.0
    %1420 = vmatprep.subr.mxu0 0.0
    %1421 = vmatpush2.msra.mxu0 0.0
    %1422 = vmatprep.subr.mxu0 0.0
    %1423 = vmatpush2.msra.mxu0 0.0
    %1424 = vmatprep.subr.mxu0 0.0
    %1425 = vmatpush2.msra.mxu0 0.0
    %1426 = vmatprep.subr.mxu0 0.0
    %1427 = vmatpush2.msra.mxu0 0.0
    %1428 = vmatprep.subr.mxu0 0.0
    %1429 = vmatpush2.msra.mxu0 0.0
    %1430 = vmatprep.subr.mxu0 0.0
    %1431 = vmatpush2.msra.mxu0 0.0
    %1432 = vmatprep.subr.mxu0 0.0
    %1433 = vmatpush2.msra.mxu0 0.0
    %1434 = vmatprep.subr.mxu0 0.0
    %1435 = vmatpush2.msra.mxu0 0.0
    %1436 = vmatprep.subr.mxu0 0.0
    %1437 = vmatpush2.msra.mxu0 0.0
    %1438 = vmatprep.subr.mxu0 0.0
    %1439 = vmatpush2.msra.mxu0 0.0
    %1440 = vmatprep.subr.mxu0 0.0
    %1441 = vmatpush2.msra.mxu0 0.0
    %1442 = vmatprep.subr.mxu0 0.0
    %1443 = vmatpush2.msra.mxu0 0.0
    %1444 = vmatprep.subr.mxu0 0.0
    %1445 = vmatpush2.msra.mxu0 0.0
    %1446 = vmatprep.subr.mxu0 0.0
    %1447 = vmatpush2.msra.mxu0 0.0
    %1448 = vmatprep.subr.mxu0 0.0
    %1449 = vmatpush2.msra.mxu0 0.0
    %1450 = vmatprep.mubr.f32.mxu0 0.0
    %1451 = vmatmul.mubr.f32.gmra.mxu0 %v1384
    %v1452 = vpop.f32.mrf.mxu0
    %v1453 = vadd.f32 0.0, %v1452
    %v1454 = vpop.f32.mrf.mxu0
    %1455 = vdwg.mxu0
    %v1456 = vadd.f32 %v1374, %v1453
    %s1457 = scalar_lea.vmem %s3, 64
    %v1458 = vld [vmem:[%s1457] sm:$0xff]
    %1459 = vrot.lane.b32.xlu0 %v807, 110
    %v1460 = vpop.permute.xlu0 %1459
    %1461 = vrot.lane.b32.xlu0 %v810, 110
    %v1462 = vpop.permute.xlu0 %1461
    %v1463 = vsel %vm720, %v1460, %v1462
    %v1466 = vsel %vm69, %v1458, 0
    %1468 = vmatprep.subr.mxu0 0.0
    %1469 = vmatpush1.msra.mxu0 0.0
    %1470 = vmatprep.subr.mxu0 0.0
    %1471 = vmatpush1.msra.mxu0 0.0
    %1472 = vmatprep.subr.mxu0 0.0
    %1473 = vmatpush1.msra.mxu0 0.0
    %1474 = vmatprep.subr.mxu0 0.0
    %1475 = vmatpush1.msra.mxu0 0.0
    %1476 = vmatprep.subr.mxu0 0.0
    %1477 = vmatpush1.msra.mxu0 0.0
    %1478 = vmatprep.subr.mxu0 0.0
    %1479 = vmatpush1.msra.mxu0 0.0
    %1480 = vmatprep.subr.mxu0 0.0
    %1481 = vmatpush1.msra.mxu0 0.0
    %1482 = vmatprep.subr.mxu0 0.0
    %1483 = vmatpush1.msra.mxu0 0.0
    %1484 = vmatprep.subr.mxu0 0.0
    %1485 = vmatpush1.msra.mxu0 0.0
    %1486 = vmatprep.subr.mxu0 0.0
    %1487 = vmatpush1.msra.mxu0 0.0
    %1488 = vmatprep.subr.mxu0 0.0
    %1489 = vmatpush1.msra.mxu0 0.0
    %1490 = vmatprep.subr.mxu0 0.0
    %1491 = vmatpush1.msra.mxu0 0.0
    %1492 = vmatprep.subr.mxu0 0.0
    %1493 = vmatpush1.msra.mxu0 0.0
    %1494 = vmatprep.subr.mxu0 0.0
    %1495 = vmatpush1.msra.mxu0 0.0
    %1496 = vmatprep.subr.mxu0 0.0
    %1497 = vmatpush1.msra.mxu0 0.0
    %1498 = vmatprep.subr.mxu0 0.0
    %1499 = vmatpush1.msra.mxu0 %v1463
    %1500 = vmatprep.subr.mxu0 0.0
    %1501 = vmatpush2.msra.mxu0 0.0
    %1502 = vmatprep.subr.mxu0 0.0
    %1503 = vmatpush2.msra.mxu0 0.0
    %1504 = vmatprep.subr.mxu0 0.0
    %1505 = vmatpush2.msra.mxu0 0.0
    %1506 = vmatprep.subr.mxu0 0.0
    %1507 = vmatpush2.msra.mxu0 0.0
    %1508 = vmatprep.subr.mxu0 0.0
    %1509 = vmatpush2.msra.mxu0 0.0
    %1510 = vmatprep.subr.mxu0 0.0
    %1511 = vmatpush2.msra.mxu0 0.0
    %1512 = vmatprep.subr.mxu0 0.0
    %1513 = vmatpush2.msra.mxu0 0.0
    %1514 = vmatprep.subr.mxu0 0.0
    %1515 = vmatpush2.msra.mxu0 0.0
    %1516 = vmatprep.subr.mxu0 0.0
    %1517 = vmatpush2.msra.mxu0 0.0
    %1518 = vmatprep.subr.mxu0 0.0
    %1519 = vmatpush2.msra.mxu0 0.0
    %1520 = vmatprep.subr.mxu0 0.0
    %1521 = vmatpush2.msra.mxu0 0.0
    %1522 = vmatprep.subr.mxu0 0.0
    %1523 = vmatpush2.msra.mxu0 0.0
    %1524 = vmatprep.subr.mxu0 0.0
    %1525 = vmatpush2.msra.mxu0 0.0
    %1526 = vmatprep.subr.mxu0 0.0
    %1527 = vmatpush2.msra.mxu0 0.0
    %1528 = vmatprep.subr.mxu0 0.0
    %1529 = vmatpush2.msra.mxu0 0.0
    %1530 = vmatprep.subr.mxu0 0.0
    %1531 = vmatpush2.msra.mxu0 0.0
    %1532 = vmatprep.mubr.f32.mxu0 0.0
    %1533 = vmatmul.mubr.f32.gmra.mxu0 %v1466
    %v1534 = vpop.f32.mrf.mxu0
    %v1535 = vadd.f32 0.0, %v1534
    %v1536 = vpop.f32.mrf.mxu0
    %1537 = vdwg.mxu0
    %v1538 = vadd.f32 %v1456, %v1535
    %v1539 = vld [vmem:[%s4] sm:$0xff]
    %1541 = vset.pattern.permute.xlu0 0
    %1542 = vperm.xlu0 %1541, %v1539
    %v1543 = vpop.permute.xlu0 %1542
    %v1545 = vadd.f32 %v1538, %v1543
    %v1546 = vmax.f32 %v1545, 0.0
    %1547 = vst [vmem:[#allocation4] sm:$0xff] %v1546
    // Predicated region
    $region22: #{tpu_custom_call.1} parent=1 // pred_check
      _
    $region23: #{tpu_custom_call.1} parent=1 // pred_check_branch
      %1549 = sbr.rel (0) target = $region25
    $region24: #{tpu_custom_call.1} parent=1 // pred_region
      %s1551 = ssub.s32 128, 128
      %1552 = vsyncadd [#allocation5], %s1551
      %s1554 = sshll.u32 [#allocation4], 4
      %s1555 = int_to_ptr.vmem [resolvable:$true] %s1554
      %1557 = dma.vmem_to_hbm [thread:$0]  %s1555, 128, %s5, [#allocation5]
    $region25: #{tpu_custom_call.1} parent=1 // pred_fallthru
      _
    // Predicated region
    $region26: #{tpu_custom_call.1} parent=1 // pred_check
      _
    $region27: #{tpu_custom_call.1} parent=1 // pred_check_branch
      %1559 = sbr.rel (0) target = $region29
    $region28: #{tpu_custom_call.1} parent=1 // pred_region
      %1560 = dma.done [#allocation5], 128
    $region29: #{tpu_custom_call.1} parent=1 // pred_fallthru
      _
    %1561 = vsyncpa [#allocation5], 1

</llo_original>
